<compile_context>
chip_gen: v5e
topology: v5e:2x2
jax: 0.10.0
libtpu: 0.0.40
codegen_flags: <defaults>
</compile_context>

<pallas_src>
import math
import warnings

import numpy as np
import jax
import jax.numpy as jnp
from jax.experimental import pallas as pl
from jax.experimental.pallas import tpu as pltpu


def _round_up(x, m):
    return ((x + m - 1) // m) * m


def _default_vmem_limit():
    """Scoped-VMEM budget derived from the actual chip:
    v5e/v6e (128 MiB physical) -> 96 MiB, v7x (64 MiB physical) -> 48 MiB."""
    cap = 64 * 1024 * 1024
    try:
        info = pltpu.get_tpu_info()
        cap = int(getattr(info, "vmem_capacity_bytes", cap))
    except Exception:
        pass
    return min(int(cap * 3 // 4), 96 * 1024 * 1024)


# Combined (mwr + mwi) single-buffer budget for one N tile of the per-row IDFT
# matrices (double-buffered by the pipeline => ~2x this in VMEM).
_MW_TILE_BUDGET = 8 * 1024 * 1024
# Lane-axis tile target for the plane frequency-interpolation matmul.
_MT_TILE_TARGET = 8192

# TODO(synk): for extremely large windows (W_pad in the tens of thousands) the
# contraction axis of the IDFT matmul should additionally be tiled (K axis).


# ---------------------------------------------------------------------------
# Pallas kernels (hot path)
# ---------------------------------------------------------------------------

def _make_qrow_kernel(m_pad):
    """Per grid step (row i, N-tile j): two MXU matmuls of the packed [Re; Im]
    spectrum against the real/imag halves of the window-folded IDFT map,
    |.|^2 on the VPU, and a fused bicubic time-interp matmul accumulated into
    the resident ti output block (reduction over j)."""

    def kernel(a_ref, mr_ref, mi_ref, wt_ref, e_ref, ti_ref):
        j = pl.program_id(1)
        a = a_ref[0]                              # (2*m_pad, W_pad)  mxu dtype
        mr = mr_ref[0]                            # (W_pad, TN)
        mi = mi_ref[0]
        pr = jnp.dot(a, mr, preferred_element_type=jnp.float32)   # (2*m_pad, TN)
        pi = jnp.dot(a, mi, preferred_element_type=jnp.float32)
        yr = pr[:m_pad] - pi[m_pad:]              # sublane-aligned split (m_pad % 8 == 0)
        yi = pi[:m_pad] + pr[m_pad:]
        e = yr * yr + yi * yi                     # (m_pad, TN) f32, 0 in padded cols
        e_ref[0] = e
        # bicubic time interpolation (ntiles -> num_t_pad), accumulated over N tiles
        @pl.when(j == 0)
        def _():
            ti_ref[...] = jnp.zeros_like(ti_ref)
        ti_ref[0] += jnp.dot(e, wt_ref[...], preferred_element_type=jnp.float32)

    return kernel


def _qrow_group(a, mwr, mwi, wt, m_pad, tn, num_t_pad, vmem_limit):
    """One pallas_call per (windowsize, ntiles) group; grid = (rows, N tiles)."""
    g, two_m, w_pad = a.shape
    n_pad = mwr.shape[-1]
    nt = n_pad // tn
    return pl.pallas_call(
        _make_qrow_kernel(m_pad),
        out_shape=(
            jax.ShapeDtypeStruct((g, m_pad, n_pad), jnp.float32),      # raw energy
            jax.ShapeDtypeStruct((g, m_pad, num_t_pad), jnp.float32),  # time-interped
        ),
        grid=(g, nt),
        in_specs=[
            pl.BlockSpec((1, two_m, w_pad), lambda i, j: (i, 0, 0)),   # resident over j
            pl.BlockSpec((1, w_pad, tn), lambda i, j: (i, 0, j)),
            pl.BlockSpec((1, w_pad, tn), lambda i, j: (i, 0, j)),
            pl.BlockSpec((tn, num_t_pad), lambda i, j: (j, 0)),
        ],
        out_specs=(
            pl.BlockSpec((1, m_pad, tn), lambda i, j: (i, 0, j)),
            pl.BlockSpec((1, m_pad, num_t_pad), lambda i, j: (i, 0, 0)),  # accumulator
        ),
        compiler_params=pltpu.CompilerParams(
            dimension_semantics=("parallel", "arbitrary"),
            vmem_limit_bytes=vmem_limit,
        ),
    )(a, mwr, mwi, wt)


def _plane_interp_kernel(wf_ref, ti_ref, o_ref):
    o_ref[0] = jnp.dot(wf_ref[0], ti_ref[0], preferred_element_type=jnp.float32)


def _plane_interp(wf_all, ti_all, mt_tile, vmem_limit):
    """Batched bicubic frequency interpolation for all Q planes, grid over
    (planes, lane-axis tiles of M*num_t_pad)."""
    p, num_f, nf_pad = wf_all.shape
    mt = ti_all.shape[2]
    return pl.pallas_call(
        _plane_interp_kernel,
        out_shape=jax.ShapeDtypeStruct((p, num_f, mt), jnp.float32),
        grid=(p, mt // mt_tile),
        in_specs=[
            pl.BlockSpec((1, num_f, nf_pad), lambda i, j: (i, 0, 0)),
            pl.BlockSpec((1, nf_pad, mt_tile), lambda i, j: (i, 0, j)),
        ],
        out_specs=pl.BlockSpec((1, num_f, mt_tile), lambda i, j: (i, 0, j)),
        compiler_params=pltpu.CompilerParams(
            dimension_semantics=("parallel", "parallel"),
            vmem_limit_bytes=vmem_limit,
        ),
    )(wf_all, ti_all)


# ---------------------------------------------------------------------------
# Static (numpy) setup: Q values, frequencies, per-row IDFT maps,
# bicubic weight matrices (PyTorch align_corners=False, A=-0.75)
# ---------------------------------------------------------------------------

def _cubic1(x, a=-0.75):
    return ((a + 2.0) * x - (a + 3.0)) * x * x + 1.0


def _cubic2(x, a=-0.75):
    return ((a * x - 5.0 * a) * x + 8.0 * a) * x - 4.0 * a


def bicubic_weight_matrix(n_in, n_out):
    """(n_in, n_out) matrix reproducing F.interpolate(mode='bicubic',
    align_corners=False) along one dim (the unchanged dim is an exact identity)."""
    w = np.zeros((n_in, n_out), dtype=np.float64)
    scale = n_in / n_out
    for o in range(n_out):
        real = scale * (o + 0.5) - 0.5
        base = math.floor(real)
        t = real - base
        coeffs = (_cubic2(t + 1.0), _cubic1(t), _cubic1(1.0 - t), _cubic2(2.0 - t))
        for k in range(4):
            idx = min(max(base - 1 + k, 0), n_in - 1)
            w[idx, o] += coeffs[k]
    return w.astype(np.float32)


def _get_freqs(q, duration, sample_rate, frange, mismatch):
    qprime = q / 11 ** 0.5
    frange = list(frange)
    if frange[0] <= 0:
        frange[0] = 50 * q / (2 * math.pi * duration)
    if math.isinf(frange[1]):
        frange[1] = sample_rate / 2 / (1 + 1 / qprime)
    minf, maxf = frange
    fcum_mismatch = math.log(maxf / minf) * (2 + q ** 2) ** 0.5 / 2.0
    deltam = 2.0 * (mismatch / 3.0) ** 0.5
    nfreq = int(max(1, math.ceil(fcum_mismatch / deltam)))
    fstep = fcum_mismatch / nfreq
    fstepmin = 1.0 / duration
    freq_base = math.exp(2.0 / (2 + q ** 2) ** 0.5 * fstep)
    freqs = np.array([freq_base ** (i + 0.5) for i in range(nfreq)],
                     dtype=np.float32).astype(np.float64)
    freqs = np.floor(minf * freqs / fstepmin) * fstepmin
    return np.unique(freqs)


def _qtile_row_params(q, frequency, duration, sample_rate, mismatch):
    deltam = 2.0 * (mismatch / 3.0) ** 0.5
    qprime = q / 11 ** 0.5
    windowsize = 2 * int(frequency / qprime * duration) + 1
    tcum_mismatch = duration * 2 * math.pi * frequency / q
    ntiles = int(2 ** math.ceil(math.log2(tcum_mismatch / deltam)))
    pad = ntiles - windowsize
    left = int((pad - 1) / 2.0)
    half = int((windowsize - 1) / 2)
    k = np.arange(-half, half + 1)
    indices = np.round(k + 1 + frequency * duration).astype(np.int64)
    wfreq = k / duration
    xfreq = wfreq * qprime / frequency
    wnorm = (ntiles / (duration * sample_rate)
             * (315 * qprime / (128 * frequency)) ** 0.5)
    window = ((1.0 - xfreq ** 2) ** 2 * wnorm).astype(np.float64)
    # Folded (zero-pad + ifftshift + ifft) linear map as a (W, ntiles) complex matrix:
    #   y[t] = (1/N) sum_w v[w] * exp(2*pi*i*(left + w - N/2)*t / N)
    # with the bi-square window pre-multiplied in (saves a VPU pass + one DMA).
    w_idx = np.arange(windowsize)
    t_idx = np.arange(ntiles)
    phase = 2.0 * np.pi * np.outer(left + w_idx - ntiles // 2, t_idx) / ntiles
    m = (np.exp(1j * phase) / ntiles) * window[:, None]
    return {
        "indices": indices,
        "W": windowsize,
        "ntiles": ntiles,
        "mw_real": m.real.astype(np.float32),
        "mw_imag": m.imag.astype(np.float32),
    }


# ---------------------------------------------------------------------------
# QScan (JAX / Pallas)
# ---------------------------------------------------------------------------

class QScanPallas:
    def __init__(self, duration, sample_rate, spectrogram_shape,
                 qrange=None, frange=None, mismatch=0.2,
                 mxu_dtype=jnp.bfloat16):
        # mxu_dtype=jnp.bfloat16 (default): the dominant HBM stream (per-row IDFT
        # matrices) and the packed spectrum ship in bf16 and hit the native bf16
        # MXU; accumulation stays f32.  Pass jnp.float32 for bit-closer parity
        # with the torch reference.
        self.duration = duration
        self.sample_rate = sample_rate
        self.spectrogram_shape = tuple(spectrogram_shape)
        self.qrange = qrange or [4, 64]
        self.frange = list(frange) if frange is not None else [0.0, math.inf]
        self.mismatch = mismatch
        self.mxu_dtype = mxu_dtype
        self._vmem_limit = _default_vmem_limit()

        max_q = math.pi * duration * sample_rate / 50 - 11 ** 0.5
        self.qs = self._get_qs()
        if self.qs[-1] >= max_q:
            warnings.warn("Some Q values exceed the maximum allowable Q; "
                          "the scan is truncated to avoid them.", stacklevel=2)
        active_qs = [q for q in self.qs if q < max_q]

        num_f, num_t = self.spectrogram_shape
        self._num_t_pad = _round_up(num_t, 128)      # lane-dense ti stores

        # --- collect all (plane, frequency) rows and group them across planes by
        #     (padded windowsize, ntiles); each group becomes one pallas_call.
        self._plane_freqs = []
        rows_by_group = {}
        for p_idx, q in enumerate(active_qs):
            freqs = _get_freqs(q, duration, sample_rate, self.frange, mismatch)
            self._plane_freqs.append(freqs)
            for pos, f in enumerate(freqs):
                row = _qtile_row_params(q, float(f), duration, sample_rate, mismatch)
                key = (_round_up(row["W"], 128), row["ntiles"])
                rows_by_group.setdefault(key, []).append((p_idx, pos, row))

        itemsize = jnp.dtype(self.mxu_dtype).itemsize
        self._plane_rows = [np.full(len(f), -1, dtype=np.int64)
                            for f in self._plane_freqs]
        self._groups = []
        global_id = 0
        for key in sorted(rows_by_group.keys()):
            w_pad, n = key
            n_pad = _round_up(n, 128)          # ntiles is a power of two -> n_pad too
            entries = rows_by_group[key]
            g = len(entries)
            idx_np = np.zeros((g, w_pad), np.int32)
            mwr_np = np.zeros((g, w_pad, n_pad), np.float32)
            mwi_np = np.zeros((g, w_pad, n_pad), np.float32)
            for gi, (p_idx, pos, row) in enumerate(entries):
                w = row["W"]
                idx_np[gi, :w] = row["indices"]
                mwr_np[gi, :w, :n] = row["mw_real"]
                mwi_np[gi, :w, :n] = row["mw_imag"]
                self._plane_rows[p_idx][pos] = global_id + gi
            wt_np = np.zeros((n_pad, self._num_t_pad), np.float32)
            wt_np[:n, :num_t] = bicubic_weight_matrix(n, num_t)
            # N-axis tile: keep one (mwr + mwi) buffer pair under budget so the
            # pipeline can double-buffer even within v7x's 64 MiB VMEM.
            tn = n_pad
            while tn > 128 and 2 * w_pad * tn * itemsize > _MW_TILE_BUDGET:
                tn //= 2
            self._groups.append({
                "idx": jnp.asarray(idx_np),
                "mwr": jnp.asarray(mwr_np).astype(self.mxu_dtype),
                "mwi": jnp.asarray(mwi_np).astype(self.mxu_dtype),
                "wt": jnp.asarray(wt_np),
                "n": n,
                "n_pad": n_pad,
                "tn": tn,
            })
            global_id += g
        assert all((r >= 0).all() for r in self._plane_rows)

        # --- batched frequency-interpolation weights (one slab for all planes)
        self._nf_max = max(len(f) for f in self._plane_freqs)
        self._nf_pad = _round_up(self._nf_max, 8)    # sublane-aligned ti planes
        nplanes = len(self._plane_freqs)
        wf_np = np.zeros((nplanes, num_f, self._nf_pad), np.float32)
        for p_idx, freqs in enumerate(self._plane_freqs):
            nf = len(freqs)
            wf_np[p_idx, :, :nf] = bicubic_weight_matrix(nf, num_f).T
        self._wf_all = jnp.asarray(wf_np)

        # whole forward is one jit: no per-row dispatches, no host-side argmax
        self._forward = jax.jit(self._forward_impl,
                                static_argnames=("fsearch_range", "norm"))

    def _get_qs(self):
        deltam = 2.0 * (self.mismatch / 3.0) ** 0.5
        cumum = math.log(self.qrange[1] / self.qrange[0]) / 2 ** 0.5
        nplanes = int(max(math.ceil(cumum / deltam), 1))
        dq = cumum / nplanes
        return [self.qrange[0] * math.exp(2 ** 0.5 * dq * (i + 0.5))
                for i in range(nplanes)]

    @staticmethod
    def _pick_mt_tile(mt, num_t_pad):
        if mt <= _MT_TILE_TARGET:
            return mt
        tile = num_t_pad
        while tile * 2 <= _MT_TILE_TARGET and mt % (tile * 2) == 0:
            tile *= 2
        return tile

    # ------------------------------------------------------------------ forward
    def _forward_impl(self, X, fsearch_range=None, norm="median"):
        if X.ndim > 3:
            raise ValueError("Input data has more than 3 dimensions")
        while X.ndim < 3:
            X = X[None]
        B, C, T = X.shape
        M = B * C
        m_pad = _round_up(M, 8)                 # sublane-aligned Re/Im split
        num_f, num_t = self.spectrogram_shape
        num_t_pad = self._num_t_pad

        # TODO(synk): no Pallas FFT primitive; the forward rfft stays in XLA, the
        # per-row inverse FFT is folded into the Pallas IDFT matmuls below.
        Xf = jnp.fft.rfft(X.astype(jnp.float32), norm="forward")
        Xf = Xf.at[..., 1:].multiply(2.0)
        xr = jnp.real(Xf).reshape(M, -1)
        xi = jnp.imag(Xf).reshape(M, -1)

        ti_chunks, mx_chunks = [], []
        for grp in self._groups:
            # TODO(synk): the window gather could move in-kernel via
            # PrefetchScalarGridSpec per-row start offsets (indices are
            # consecutive integers); kept in XLA for now.
            idx = grp["idx"]                                        # (G, W_pad)
            ar = jnp.take(xr, idx, axis=1).transpose(1, 0, 2)       # (G, M, W_pad)
            ai = jnp.take(xi, idx, axis=1).transpose(1, 0, 2)
            pad = ((0, 0), (0, m_pad - M), (0, 0))
            a = jnp.concatenate([jnp.pad(ar, pad), jnp.pad(ai, pad)], axis=1)
            a = a.astype(self.mxu_dtype)                            # (G, 2*m_pad, W_pad)

            e, ti = _qrow_group(a, grp["mwr"], grp["mwi"], grp["wt"],
                                m_pad, grp["tn"], num_t_pad, self._vmem_limit)
            n = grp["n"]
            e = e[:, :M, :n]                    # drop row / column padding
            ti = ti[:, :M, :]
            # Per-row max from the energy plane that XLA already reads for the
            # median (replaces the old lane-sparse width-1 in-kernel output).
            row_max = jnp.max(e, axis=-1)       # (G, M)
            if norm == "median":
                # TODO(synk): sort/quantile has no clean Pallas TPU lowering; the
                # median stays in XLA (matches torch.quantile(q=0.5)) and its
                # reciprocal is folded into the already-interpolated outputs.
                stat = jnp.quantile(e, 0.5, axis=-1, keepdims=True)
            elif norm == "mean":
                stat = jnp.mean(e, axis=-1, keepdims=True)
            elif norm is None:
                stat = jnp.ones((1, 1, 1), jnp.float32)
            else:
                raise ValueError("Invalid normalisation %r" % norm)
            ti_chunks.append(ti / stat)         # row scale commutes with time interp
            mx_chunks.append(row_max / stat[..., 0])

        all_ti = jnp.concatenate(ti_chunks, axis=0)   # (R, M, num_t_pad)
        all_mx = jnp.concatenate(mx_chunks, axis=0)   # (R, M)

        # TODO(synk): the plane regrouping below could be folded into the qrow
        # kernel's out_spec with a scalar-prefetched row->(plane,pos) table.
        nf_pad = self._nf_pad
        ti_planes, plane_max = [], []
        for p_idx, row_ids in enumerate(self._plane_rows):
            rows = all_ti[row_ids].reshape(len(row_ids), M * num_t_pad)
            rows = jnp.pad(rows, ((0, nf_pad - rows.shape[0]), (0, 0)))
            ti_planes.append(rows)
            if fsearch_range is not None:
                freqs = self._plane_freqs[p_idx]
                above_lo = np.nonzero(freqs > fsearch_range[0])[0]
                above_hi = np.nonzero(freqs > fsearch_range[1])[0]
                start = int(above_lo.min()) if above_lo.size else len(freqs)
                stop = int(above_hi.min()) if above_hi.size else len(freqs)
                sel = row_ids[start:stop]
            else:
                sel = row_ids
            if len(sel):
                plane_max.append(jnp.max(all_mx[sel]))
            else:
                plane_max.append(jnp.asarray(-jnp.inf, jnp.float32))

        ti_all = jnp.stack(ti_planes, axis=0)          # (P, nf_pad, M*num_t_pad)
        mt_tile = self._pick_mt_tile(M * num_t_pad, num_t_pad)
        spec = _plane_interp(self._wf_all, ti_all, mt_tile, self._vmem_limit)
        spec = spec.reshape(-1, num_f, B, C, num_t_pad)
        spec = jnp.transpose(spec, (0, 2, 3, 1, 4))    # (P, B, C, num_f, num_t_pad)

        best = jnp.argmax(jnp.stack(plane_max))        # on-device plane selection
        out = jnp.take(spec, best, axis=0)[..., :num_t]
        return jnp.squeeze(out)

    def __call__(self, X, fsearch_range=None, norm="median"):
        norm = norm.lower() if isinstance(norm, str) else norm
        fr = (tuple(float(v) for v in fsearch_range)
              if fsearch_range is not None else None)
        return self._forward(X, fsearch_range=fr, norm=norm)


# ---------------------------------------------------------------------------
# Demo
# ---------------------------------------------------------------------------

if __name__ == "__main__":
    duration = 2.0
    sample_rate = 128.0
    B, C = 2, 2
    T = int(duration * sample_rate)            # 256 samples
    spectrogram_shape = (16, 32)               # (num_f_bins, num_t_bins)

    key = jax.random.PRNGKey(0)
    X = jax.random.normal(key, (B, C, T), dtype=jnp.float32)

    scan = QScanPallas(duration, sample_rate, spectrogram_shape, qrange=[4, 16])
    out = scan(X)
    out = jax.block_until_ready(out)
    # second call hits the jit cache (no retrace, no host sync)
    out = jax.block_until_ready(scan(X))

    assert out.shape == (B, C, spectrogram_shape[0], spectrogram_shape[1]), out.shape
    assert out.dtype == jnp.float32
    assert bool(jnp.all(jnp.isfinite(out)))
    print("KERNEL_OK")
</pallas_src>

<mosaic_0001>
module attributes {stable_mosaic.version = 11 : i64} {
  func.func @kernel(%arg0: i32, %arg1: i32, %arg2: memref<1x16x128xbf16, #tpu.memory_space<vmem>>, %arg3: memref<1x128x128xbf16, #tpu.memory_space<vmem>>, %arg4: memref<1x128x128xbf16, #tpu.memory_space<vmem>>, %arg5: memref<128x128xf32, #tpu.memory_space<vmem>>, %arg6: memref<1x8x128xf32, #tpu.memory_space<vmem>>, %arg7: memref<1x8x128xf32, #tpu.memory_space<vmem>>) attributes {dimension_semantics = [#tpu.dimension_semantics<parallel>, #tpu.dimension_semantics<arbitrary>], iteration_bounds = array<i64: 4, 1>, scalar_prefetch = 0 : i64, scratch_operands = 0 : i64, tpu.core_type = #tpu.core_type<tc>, window_params = [{transform_indices = @transform_0, window_bounds = array<i64: 1, 16, 128>}, {transform_indices = @transform_1, window_bounds = array<i64: 1, 128, 128>}, {transform_indices = @transform_2, window_bounds = array<i64: 1, 128, 128>}, {transform_indices = @transform_3, window_bounds = array<i64: 128, 128>}, {transform_indices = @transform_4, window_bounds = array<i64: 1, 8, 128>}, {transform_indices = @transform_5, window_bounds = array<i64: 1, 8, 128>}]} {
    %c0 = arith.constant 0 : index
    %c0_0 = arith.constant 0 : index
    %c0_1 = arith.constant 0 : index
    %0 = vector.load %arg2[%c0, %c0_0, %c0_1] : memref<1x16x128xbf16, #tpu.memory_space<vmem>>, vector<1x16x128xbf16>
    %1 = vector.shape_cast %0 : vector<1x16x128xbf16> to vector<16x128xbf16>
    %c0_2 = arith.constant 0 : index
    %c0_3 = arith.constant 0 : index
    %c0_4 = arith.constant 0 : index
    %2 = vector.load %arg3[%c0_2, %c0_3, %c0_4] : memref<1x128x128xbf16, #tpu.memory_space<vmem>>, vector<1x128x128xbf16>
    %3 = vector.shape_cast %2 : vector<1x128x128xbf16> to vector<128x128xbf16>
    %c0_5 = arith.constant 0 : index
    %c0_6 = arith.constant 0 : index
    %c0_7 = arith.constant 0 : index
    %4 = vector.load %arg4[%c0_5, %c0_6, %c0_7] : memref<1x128x128xbf16, #tpu.memory_space<vmem>>, vector<1x128x128xbf16>
    %5 = vector.shape_cast %4 : vector<1x128x128xbf16> to vector<128x128xbf16>
    %cst = arith.constant dense<0.000000e+00> : vector<16x128xf32>
    %6 = tpu.matmul %1, %3, %cst {dimension_numbers = #tpu.dot_dimension_numbers<[1], [0], [0], [1], [0, 0, 1, 1], [], []>} : vector<16x128xbf16>, vector<128x128xbf16>, vector<16x128xf32> -> vector<16x128xf32>
    %cst_8 = arith.constant dense<0.000000e+00> : vector<16x128xf32>
    %7 = tpu.matmul %1, %5, %cst_8 {dimension_numbers = #tpu.dot_dimension_numbers<[1], [0], [0], [1], [0, 0, 1, 1], [], []>} : vector<16x128xbf16>, vector<128x128xbf16>, vector<16x128xf32> -> vector<16x128xf32>
    %8 = vector.extract_strided_slice %6 {offsets = [0, 0], sizes = [8, 128], strides = [1, 1]} : vector<16x128xf32> to vector<8x128xf32>
    %9 = vector.extract_strided_slice %7 {offsets = [8, 0], sizes = [8, 128], strides = [1, 1]} : vector<16x128xf32> to vector<8x128xf32>
    %10 = arith.subf %8, %9 : vector<8x128xf32>
    %11 = vector.extract_strided_slice %7 {offsets = [0, 0], sizes = [8, 128], strides = [1, 1]} : vector<16x128xf32> to vector<8x128xf32>
    %12 = vector.extract_strided_slice %6 {offsets = [8, 0], sizes = [8, 128], strides = [1, 1]} : vector<16x128xf32> to vector<8x128xf32>
    %13 = arith.addf %11, %12 : vector<8x128xf32>
    %14 = arith.mulf %10, %10 : vector<8x128xf32>
    %15 = arith.mulf %13, %13 : vector<8x128xf32>
    %16 = arith.addf %14, %15 : vector<8x128xf32>
    %c0_9 = arith.constant 0 : index
    %c0_10 = arith.constant 0 : index
    %c0_11 = arith.constant 0 : index
    %17 = vector.load %arg6[%c0_9, %c0_10, %c0_11] : memref<1x8x128xf32, #tpu.memory_space<vmem>>, vector<1x8x128xf32>
    %18 = vector.shape_cast %17 : vector<1x8x128xf32> to vector<8x128xf32>
    %19 = vector.shape_cast %16 : vector<8x128xf32> to vector<1x8x128xf32>
    tpu.vector_store %arg6[%c0_9, %c0_10, %c0_11], %19 {strides = array<i32>} : memref<1x8x128xf32, #tpu.memory_space<vmem>>, vector<1x8x128xf32>,
    %c0_i32 = arith.constant 0 : i32
    %20 = arith.cmpi eq, %arg1, %c0_i32 : i32
    %21 = arith.extui %20 : i1 to i32
    %c0_i32_12 = arith.constant 0 : i32
    %22 = arith.cmpi ne, %21, %c0_i32_12 : i32
    scf.if %22 {
      %cst_22 = arith.constant 0.000000e+00 : f32
      %31 = vector.broadcast %cst_22 : f32 to vector<1x8x128xf32>
      %c0_23 = arith.constant 0 : index
      %c0_24 = arith.constant 0 : index
      %c0_25 = arith.constant 0 : index
      %32 = vector.load %arg7[%c0_23, %c0_24, %c0_25] : memref<1x8x128xf32, #tpu.memory_space<vmem>>, vector<1x8x128xf32>
      tpu.vector_store %arg7[%c0_23, %c0_24, %c0_25], %31 {strides = array<i32>} : memref<1x8x128xf32, #tpu.memory_space<vmem>>, vector<1x8x128xf32>,
    } else {
    }
    %c0_13 = arith.constant 0 : index
    %c0_14 = arith.constant 0 : index
    %c0_15 = arith.constant 0 : index
    %23 = vector.load %arg7[%c0_13, %c0_14, %c0_15] : memref<1x8x128xf32, #tpu.memory_space<vmem>>, vector<1x8x128xf32>
    %24 = vector.shape_cast %23 : vector<1x8x128xf32> to vector<8x128xf32>
    %c0_16 = arith.constant 0 : index
    %c0_17 = arith.constant 0 : index
    %25 = vector.load %arg5[%c0_16, %c0_17] : memref<128x128xf32, #tpu.memory_space<vmem>>, vector<128x128xf32>
    %cst_18 = arith.constant dense<0.000000e+00> : vector<8x128xf32>
    %26 = tpu.matmul %16, %25, %cst_18 {dimension_numbers = #tpu.dot_dimension_numbers<[1], [0], [0], [1], [0, 0, 1, 1], [], []>} : vector<8x128xf32>, vector<128x128xf32>, vector<8x128xf32> -> vector<8x128xf32>
    %27 = arith.addf %24, %26 : vector<8x128xf32>
    %c0_19 = arith.constant 0 : index
    %c0_20 = arith.constant 0 : index
    %c0_21 = arith.constant 0 : index
    %28 = vector.load %arg7[%c0_19, %c0_20, %c0_21] : memref<1x8x128xf32, #tpu.memory_space<vmem>>, vector<1x8x128xf32>
    %29 = vector.shape_cast %28 : vector<1x8x128xf32> to vector<8x128xf32>
    %30 = vector.shape_cast %27 : vector<8x128xf32> to vector<1x8x128xf32>
    tpu.vector_store %arg7[%c0_19, %c0_20, %c0_21], %30 {strides = array<i32>} : memref<1x8x128xf32, #tpu.memory_space<vmem>>, vector<1x8x128xf32>,
    return
  }
  func.func @transform_0(%arg0: i32, %arg1: i32) -> (i32, i32, i32) {
    %c0_i32 = arith.constant 0 : i32
    %c0_i32_0 = arith.constant 0 : i32
    %c0_i32_1 = arith.constant 0 : i32
    return %arg0, %c0_i32, %c0_i32_0 : i32, i32, i32
  }
  func.func @transform_1(%arg0: i32, %arg1: i32) -> (i32, i32, i32) {
    %c0_i32 = arith.constant 0 : i32
    %c0_i32_0 = arith.constant 0 : i32
    return %arg0, %c0_i32, %arg1 : i32, i32, i32
  }
  func.func @transform_2(%arg0: i32, %arg1: i32) -> (i32, i32, i32) {
    %c0_i32 = arith.constant 0 : i32
    %c0_i32_0 = arith.constant 0 : i32
    return %arg0, %c0_i32, %arg1 : i32, i32, i32
  }
  func.func @transform_3(%arg0: i32, %arg1: i32) -> (i32, i32) {
    %c0_i32 = arith.constant 0 : i32
    %c0_i32_0 = arith.constant 0 : i32
    return %arg1, %c0_i32 : i32, i32
  }
  func.func @transform_4(%arg0: i32, %arg1: i32) -> (i32, i32, i32) {
    %c0_i32 = arith.constant 0 : i32
    %c0_i32_0 = arith.constant 0 : i32
    return %arg0, %c0_i32, %arg1 : i32, i32, i32
  }
  func.func @transform_5(%arg0: i32, %arg1: i32) -> (i32, i32, i32) {
    %c0_i32 = arith.constant 0 : i32
    %c0_i32_0 = arith.constant 0 : i32
    %c0_i32_1 = arith.constant 0 : i32
    return %arg0, %c0_i32, %c0_i32_0 : i32, i32, i32
  }
}

module attributes {stable_mosaic.version = 11 : i64} {
  func.func @kernel(%arg0: i32, %arg1: i32, %arg2: memref<1x16x128xbf16, #tpu.memory_space<vmem>>, %arg3: memref<1x128x256xbf16, #tpu.memory_space<vmem>>, %arg4: memref<1x128x256xbf16, #tpu.memory_space<vmem>>, %arg5: memref<256x128xf32, #tpu.memory_space<vmem>>, %arg6: memref<1x8x256xf32, #tpu.memory_space<vmem>>, %arg7: memref<1x8x128xf32, #tpu.memory_space<vmem>>) attributes {dimension_semantics = [#tpu.dimension_semantics<parallel>, #tpu.dimension_semantics<arbitrary>], iteration_bounds = array<i64: 2, 1>, scalar_prefetch = 0 : i64, scratch_operands = 0 : i64, tpu.core_type = #tpu.core_type<tc>, window_params = [{transform_indices = @transform_0, window_bounds = array<i64: 1, 16, 128>}, {transform_indices = @transform_1, window_bounds = array<i64: 1, 128, 256>}, {transform_indices = @transform_2, window_bounds = array<i64: 1, 128, 256>}, {transform_indices = @transform_3, window_bounds = array<i64: 256, 128>}, {transform_indices = @transform_4, window_bounds = array<i64: 1, 8, 256>}, {transform_indices = @transform_5, window_bounds = array<i64: 1, 8, 128>}]} {
    %c0 = arith.constant 0 : index
    %c0_0 = arith.constant 0 : index
    %c0_1 = arith.constant 0 : index
    %0 = vector.load %arg2[%c0, %c0_0, %c0_1] : memref<1x16x128xbf16, #tpu.memory_space<vmem>>, vector<1x16x128xbf16>
    %1 = vector.shape_cast %0 : vector<1x16x128xbf16> to vector<16x128xbf16>
    %c0_2 = arith.constant 0 : index
    %c0_3 = arith.constant 0 : index
    %c0_4 = arith.constant 0 : index
    %2 = vector.load %arg3[%c0_2, %c0_3, %c0_4] : memref<1x128x256xbf16, #tpu.memory_space<vmem>>, vector<1x128x256xbf16>
    %3 = vector.shape_cast %2 : vector<1x128x256xbf16> to vector<128x256xbf16>
    %c0_5 = arith.constant 0 : index
    %c0_6 = arith.constant 0 : index
    %c0_7 = arith.constant 0 : index
    %4 = vector.load %arg4[%c0_5, %c0_6, %c0_7] : memref<1x128x256xbf16, #tpu.memory_space<vmem>>, vector<1x128x256xbf16>
    %5 = vector.shape_cast %4 : vector<1x128x256xbf16> to vector<128x256xbf16>
    %cst = arith.constant dense<0.000000e+00> : vector<16x256xf32>
    %6 = tpu.matmul %1, %3, %cst {dimension_numbers = #tpu.dot_dimension_numbers<[1], [0], [0], [1], [0, 0, 1, 1], [], []>} : vector<16x128xbf16>, vector<128x256xbf16>, vector<16x256xf32> -> vector<16x256xf32>
    %cst_8 = arith.constant dense<0.000000e+00> : vector<16x256xf32>
    %7 = tpu.matmul %1, %5, %cst_8 {dimension_numbers = #tpu.dot_dimension_numbers<[1], [0], [0], [1], [0, 0, 1, 1], [], []>} : vector<16x128xbf16>, vector<128x256xbf16>, vector<16x256xf32> -> vector<16x256xf32>
    %8 = vector.extract_strided_slice %6 {offsets = [0, 0], sizes = [8, 256], strides = [1, 1]} : vector<16x256xf32> to vector<8x256xf32>
    %9 = vector.extract_strided_slice %7 {offsets = [8, 0], sizes = [8, 256], strides = [1, 1]} : vector<16x256xf32> to vector<8x256xf32>
    %10 = arith.subf %8, %9 : vector<8x256xf32>
    %11 = vector.extract_strided_slice %7 {offsets = [0, 0], sizes = [8, 256], strides = [1, 1]} : vector<16x256xf32> to vector<8x256xf32>
    %12 = vector.extract_strided_slice %6 {offsets = [8, 0], sizes = [8, 256], strides = [1, 1]} : vector<16x256xf32> to vector<8x256xf32>
    %13 = arith.addf %11, %12 : vector<8x256xf32>
    %14 = arith.mulf %10, %10 : vector<8x256xf32>
    %15 = arith.mulf %13, %13 : vector<8x256xf32>
    %16 = arith.addf %14, %15 : vector<8x256xf32>
    %c0_9 = arith.constant 0 : index
    %c0_10 = arith.constant 0 : index
    %c0_11 = arith.constant 0 : index
    %17 = vector.load %arg6[%c0_9, %c0_10, %c0_11] : memref<1x8x256xf32, #tpu.memory_space<vmem>>, vector<1x8x256xf32>
    %18 = vector.shape_cast %17 : vector<1x8x256xf32> to vector<8x256xf32>
    %19 = vector.shape_cast %16 : vector<8x256xf32> to vector<1x8x256xf32>
    tpu.vector_store %arg6[%c0_9, %c0_10, %c0_11], %19 {strides = array<i32>} : memref<1x8x256xf32, #tpu.memory_space<vmem>>, vector<1x8x256xf32>,
    %c0_i32 = arith.constant 0 : i32
    %20 = arith.cmpi eq, %arg1, %c0_i32 : i32
    %21 = arith.extui %20 : i1 to i32
    %c0_i32_12 = arith.constant 0 : i32
    %22 = arith.cmpi ne, %21, %c0_i32_12 : i32
    scf.if %22 {
      %cst_22 = arith.constant 0.000000e+00 : f32
      %31 = vector.broadcast %cst_22 : f32 to vector<1x8x128xf32>
      %c0_23 = arith.constant 0 : index
      %c0_24 = arith.constant 0 : index
      %c0_25 = arith.constant 0 : index
      %32 = vector.load %arg7[%c0_23, %c0_24, %c0_25] : memref<1x8x128xf32, #tpu.memory_space<vmem>>, vector<1x8x128xf32>
      tpu.vector_store %arg7[%c0_23, %c0_24, %c0_25], %31 {strides = array<i32>} : memref<1x8x128xf32, #tpu.memory_space<vmem>>, vector<1x8x128xf32>,
    } else {
    }
    %c0_13 = arith.constant 0 : index
    %c0_14 = arith.constant 0 : index
    %c0_15 = arith.constant 0 : index
    %23 = vector.load %arg7[%c0_13, %c0_14, %c0_15] : memref<1x8x128xf32, #tpu.memory_space<vmem>>, vector<1x8x128xf32>
    %24 = vector.shape_cast %23 : vector<1x8x128xf32> to vector<8x128xf32>
    %c0_16 = arith.constant 0 : index
    %c0_17 = arith.constant 0 : index
    %25 = vector.load %arg5[%c0_16, %c0_17] : memref<256x128xf32, #tpu.memory_space<vmem>>, vector<256x128xf32>
    %cst_18 = arith.constant dense<0.000000e+00> : vector<8x128xf32>
    %26 = tpu.matmul %16, %25, %cst_18 {dimension_numbers = #tpu.dot_dimension_numbers<[1], [0], [0], [1], [0, 0, 1, 1], [], []>} : vector<8x256xf32>, vector<256x128xf32>, vector<8x128xf32> -> vector<8x128xf32>
    %27 = arith.addf %24, %26 : vector<8x128xf32>
    %c0_19 = arith.constant 0 : index
    %c0_20 = arith.constant 0 : index
    %c0_21 = arith.constant 0 : index
    %28 = vector.load %arg7[%c0_19, %c0_20, %c0_21] : memref<1x8x128xf32, #tpu.memory_space<vmem>>, vector<1x8x128xf32>
    %29 = vector.shape_cast %28 : vector<1x8x128xf32> to vector<8x128xf32>
    %30 = vector.shape_cast %27 : vector<8x128xf32> to vector<1x8x128xf32>
    tpu.vector_store %arg7[%c0_19, %c0_20, %c0_21], %30 {strides = array<i32>} : memref<1x8x128xf32, #tpu.memory_space<vmem>>, vector<1x8x128xf32>,
    return
  }
  func.func @transform_0(%arg0: i32, %arg1: i32) -> (i32, i32, i32) {
    %c0_i32 = arith.constant 0 : i32
    %c0_i32_0 = arith.constant 0 : i32
    %c0_i32_1 = arith.constant 0 : i32
    return %arg0, %c0_i32, %c0_i32_0 : i32, i32, i32
  }
  func.func @transform_1(%arg0: i32, %arg1: i32) -> (i32, i32, i32) {
    %c0_i32 = arith.constant 0 : i32
    %c0_i32_0 = arith.constant 0 : i32
    return %arg0, %c0_i32, %arg1 : i32, i32, i32
  }
  func.func @transform_2(%arg0: i32, %arg1: i32) -> (i32, i32, i32) {
    %c0_i32 = arith.constant 0 : i32
    %c0_i32_0 = arith.constant 0 : i32
    return %arg0, %c0_i32, %arg1 : i32, i32, i32
  }
  func.func @transform_3(%arg0: i32, %arg1: i32) -> (i32, i32) {
    %c0_i32 = arith.constant 0 : i32
    %c0_i32_0 = arith.constant 0 : i32
    return %arg1, %c0_i32 : i32, i32
  }
  func.func @transform_4(%arg0: i32, %arg1: i32) -> (i32, i32, i32) {
    %c0_i32 = arith.constant 0 : i32
    %c0_i32_0 = arith.constant 0 : i32
    return %arg0, %c0_i32, %arg1 : i32, i32, i32
  }
  func.func @transform_5(%arg0: i32, %arg1: i32) -> (i32, i32, i32) {
    %c0_i32 = arith.constant 0 : i32
    %c0_i32_0 = arith.constant 0 : i32
    %c0_i32_1 = arith.constant 0 : i32
    return %arg0, %c0_i32, %c0_i32_0 : i32, i32, i32
  }
}

module attributes {stable_mosaic.version = 11 : i64} {
  func.func @_plane_interp_kernel(%arg0: i32, %arg1: i32, %arg2: memref<1x16x8xf32, #tpu.memory_space<vmem>>, %arg3: memref<1x8x512xf32, #tpu.memory_space<vmem>>, %arg4: memref<1x16x512xf32, #tpu.memory_space<vmem>>) attributes {dimension_semantics = [#tpu.dimension_semantics<parallel>, #tpu.dimension_semantics<parallel>], iteration_bounds = array<i64: 2, 1>, scalar_prefetch = 0 : i64, scratch_operands = 0 : i64, tpu.core_type = #tpu.core_type<tc>, window_params = [{transform_indices = @transform_0, window_bounds = array<i64: 1, 16, 8>}, {transform_indices = @transform_1, window_bounds = array<i64: 1, 8, 512>}, {transform_indices = @transform_2, window_bounds = array<i64: 1, 16, 512>}]} {
    %c0 = arith.constant 0 : index
    %c0_0 = arith.constant 0 : index
    %c0_1 = arith.constant 0 : index
    %0 = vector.load %arg2[%c0, %c0_0, %c0_1] : memref<1x16x8xf32, #tpu.memory_space<vmem>>, vector<1x16x8xf32>
    %1 = vector.shape_cast %0 : vector<1x16x8xf32> to vector<16x8xf32>
    %c0_2 = arith.constant 0 : index
    %c0_3 = arith.constant 0 : index
    %c0_4 = arith.constant 0 : index
    %2 = vector.load %arg3[%c0_2, %c0_3, %c0_4] : memref<1x8x512xf32, #tpu.memory_space<vmem>>, vector<1x8x512xf32>
    %3 = vector.shape_cast %2 : vector<1x8x512xf32> to vector<8x512xf32>
    %cst = arith.constant dense<0.000000e+00> : vector<16x512xf32>
    %4 = tpu.matmul %1, %3, %cst {dimension_numbers = #tpu.dot_dimension_numbers<[1], [0], [0], [1], [0, 0, 1, 1], [], []>} : vector<16x8xf32>, vector<8x512xf32>, vector<16x512xf32> -> vector<16x512xf32>
    %c0_5 = arith.constant 0 : index
    %c0_6 = arith.constant 0 : index
    %c0_7 = arith.constant 0 : index
    %5 = vector.load %arg4[%c0_5, %c0_6, %c0_7] : memref<1x16x512xf32, #tpu.memory_space<vmem>>, vector<1x16x512xf32>
    %6 = vector.shape_cast %5 : vector<1x16x512xf32> to vector<16x512xf32>
    %7 = vector.shape_cast %4 : vector<16x512xf32> to vector<1x16x512xf32>
    tpu.vector_store %arg4[%c0_5, %c0_6, %c0_7], %7 {strides = array<i32>} : memref<1x16x512xf32, #tpu.memory_space<vmem>>, vector<1x16x512xf32>,
    return
  }
  func.func @transform_0(%arg0: i32, %arg1: i32) -> (i32, i32, i32) {
    %c0_i32 = arith.constant 0 : i32
    %c0_i32_0 = arith.constant 0 : i32
    %c0_i32_1 = arith.constant 0 : i32
    return %arg0, %c0_i32, %c0_i32_0 : i32, i32, i32
  }
  func.func @transform_1(%arg0: i32, %arg1: i32) -> (i32, i32, i32) {
    %c0_i32 = arith.constant 0 : i32
    %c0_i32_0 = arith.constant 0 : i32
    return %arg0, %c0_i32, %arg1 : i32, i32, i32
  }
  func.func @transform_2(%arg0: i32, %arg1: i32) -> (i32, i32, i32) {
    %c0_i32 = arith.constant 0 : i32
    %c0_i32_0 = arith.constant 0 : i32
    return %arg0, %c0_i32, %arg1 : i32, i32, i32
  }
}

</mosaic_0001>

<llo_original>
// kernel: div.16
$region0: #{div.16}
  #allocation0 [shape = 's32[1]{0}', space=sflag, size = 0x4, scoped, tag = 'scoped memory for div.16']
  %s0 = inlined_call_operand.vmem [shape: f32[4,4], index: 0, kind: input, shape index: {}]
  %s1 = inlined_call_operand.vmem [shape: f32[4,4], index: 1, kind: input, shape index: {}]
  %s2 = inlined_call_operand.vmem [shape: f32[4,4], index: 2, kind: output, shape index: {}]
  %v3 = vld [vmem:[%s0] sm:$0xf]
  %v4 = vld [vmem:[%s1] sm:$0xf]
  %5 = xla_tuple %v3, %v4
  %6 = xla_tuple %5
  %v7 = vrcp.pop %v4
  %v8 = vmul.f32 %v4, %v7
  %v9 = vsub.f32 1.0, %v8
  %v10 = vmul.f32 %v7, %v9
  %v11 = vadd.f32 %v7, %v10
  %vm12 = vweird.f32 %v4
  %vm13 = vweird.f32 %v7
  %vm14 = vmor %vm12, %vm13
  %v15 = vsel %vm14, %v7, %v11
  %v16 = vand.u32 2147483647, %v4
  %vm17 = vcmp.eq.f32.partialorder %v16, 8.507059e+37
  %v18 = vand.u32 %v4, 2147483648
  %v19 = vor.u32 1.1754944e-38, %v18
  %v20 = vsel %vm17, %v19, %v15
  %v21 = vmul.f32 %v3, %v20
  %22 = xla_tuple %v21
  %23 = vst [vmem:[%s2] sm:$0xf] %v21

// kernel: _forward_impl.3
$region0: #{_forward_impl.3}
  #allocation0 [shape = 'u32[]', space=smem, size = 0x4, offset = 0x4, fixed_abs, tag = 'smem constant byte address 0x4 - core index']
  #allocation1 [shape = 'u32[72,128]{1,0:T(1,128)}', space=vmem, size = 0x9000, scoped, tag = 'internal scratch']
  %s0 = inlined_call_operand.vmem [shape: bf16[4,16,128], index: 0, kind: input, shape index: {}]
  %s1 = inlined_call_operand.vmem [shape: bf16[4,128,128], index: 1, kind: input, shape index: {}]
  %s2 = inlined_call_operand.vmem [shape: bf16[4,128,128], index: 2, kind: input, shape index: {}]
  %s3 = inlined_call_operand.vmem [shape: f32[128,128], index: 3, kind: input, shape index: {}]
  %s4 = inlined_call_operand.vmem [shape: f32[4,8,128], index: 4, kind: output, shape index: {0}]
  %s5 = inlined_call_operand.vmem [shape: f32[4,8,128], index: 5, kind: output, shape index: {1}]
  %6 = xla_tuple %s4, %s5
  %s7 = sld [smem:[#allocation0]]
  $region61: #{_forward_impl.3} parent=0
    _
  %s9 = ssub.s32 1, %s7
  %s10 = scalar_select 0, %s9, %s7
  loop: start=0, step=1, limit=6
  $region2: #{_forward_impl.3} parent=0 // loop_pre_header
    _
  $region3: #{_forward_impl.3} parent=0 // loop_header
    %s12 = sphi 0, %s16
    %p13 = scmp.ge.s32.totalorder %s12, 6
    %s19 = sphi 0, %s31
    %s20 = sphi 0, %s27
    %s21 = sphi 0, %s19
    %s22 = sphi 0, %s20
    %s23 = sphi 0, %s21
    %s24 = sphi 0, %s22
    %s34 = sphi 0, %s36
    %s37 = sphi 0, %s34
    %s38 = sphi 0, %s37
    %s54 = sphi 0, %s38
    %s62 = sphi 0, %s64
    %s65 = sphi 0, %s62
    %s66 = sphi 0, %s65
    %s82 = sphi 0, %s66
    %s90 = sphi 0, %s92
    %s93 = sphi 0, %s90
    %s94 = sphi 0, %s93
    %s110 = sphi 0, %s94
    %s116 = sphi 0, %s118
    %s119 = sphi 0, %s116
    %s120 = sphi 0, %s119
    %s136 = sphi 0, %s120
    %s144 = sphi 0, %s146
    %s147 = sphi 0, %s144
    %s148 = sphi 0, %s147
    %s164 = sphi 0, %s148
    %s170 = sphi 0, %s172
    %s173 = sphi 0, %s170
    %s174 = sphi 0, %s173
    %s190 = sphi 0, %s174
  $region4: #{_forward_impl.3} parent=0 // loop_header_branch
    %15 = sbr.rel (%p13) target = $region8
  $region5: #{_forward_impl.3} parent=0 // loop_body
    %s17 = ssub.s32 %s12, 1
    %s18 = ssub.s32 %s12, 2
    %s25 = sadd.s32 1, %s20
    %p26 = scmp.ge.s32.totalorder %s25, 1
    %s27 = scalar_select %p26, 0, %s25
    %s28 = sadd.s32 1, %s19
    %s29 = scalar_select %p26, %s28, %s19
    %p30 = scmp.ge.s32.totalorder %s29, 4
    %s31 = scalar_select %p30, 0, %s29
    %s32 = ssub.s32 %s19, %s31
    %p33 = scmp.eq.s32.totalorder %s32, 0
    %s35 = sadd.s32 %s34, 1
    %s36 = scalar_select %p33, %s34, %s35
    %p39 = pneg %p33
    %p40 = scmp.eq.s32.totalorder %s12, 3
    %p41 = por %p39, %p40
    %p42 = scmp.ne.s32.totalorder %s34, %s37
    %p43 = scmp.eq.s32.totalorder %s12, 0
    %p44 = por %p42, %p43
    %p45 = scmp.ne.s32.totalorder %s34, %s37
    %p46 = scmp.eq.s32.totalorder %s17, 3
    %p47 = por %p45, %p46
    %p48 = scmp.ne.s32.totalorder %s37, %s38
    %p49 = scmp.eq.s32.totalorder %s17, 0
    %p50 = por %p48, %p49
    %p51 = scmp.ne.s32.totalorder %s37, %s38
    %p52 = scmp.eq.s32.totalorder %s18, 3
    %p53 = por %p51, %p52
    %p55 = scmp.ne.s32.totalorder %s38, %s54
    %p56 = scmp.eq.s32.totalorder %s18, 0
    %p57 = por %p55, %p56
    %s58 = ssub.s32 %s19, %s31
    %s59 = ssub.s32 %s20, %s27
    %s60 = sor.u32 %s58, %s59
    %p61 = scmp.eq.s32.totalorder %s60, 0
    %s63 = sadd.s32 %s62, 1
    %s64 = scalar_select %p61, %s62, %s63
    %p67 = pneg %p61
    %p68 = scmp.eq.s32.totalorder %s12, 3
    %p69 = por %p67, %p68
    %p70 = scmp.ne.s32.totalorder %s62, %s65
    %p71 = scmp.eq.s32.totalorder %s12, 0
    %p72 = por %p70, %p71
    %p73 = scmp.ne.s32.totalorder %s62, %s65
    %p74 = scmp.eq.s32.totalorder %s17, 3
    %p75 = por %p73, %p74
    %p76 = scmp.ne.s32.totalorder %s65, %s66
    %p77 = scmp.eq.s32.totalorder %s17, 0
    %p78 = por %p76, %p77
    %p79 = scmp.ne.s32.totalorder %s65, %s66
    %p80 = scmp.eq.s32.totalorder %s18, 3
    %p81 = por %p79, %p80
    %p83 = scmp.ne.s32.totalorder %s66, %s82
    %p84 = scmp.eq.s32.totalorder %s18, 0
    %p85 = por %p83, %p84
    %s86 = ssub.s32 %s19, %s31
    %s87 = ssub.s32 %s20, %s27
    %s88 = sor.u32 %s86, %s87
    %p89 = scmp.eq.s32.totalorder %s88, 0
    %s91 = sadd.s32 %s90, 1
    %s92 = scalar_select %p89, %s90, %s91
    %p95 = pneg %p89
    %p96 = scmp.eq.s32.totalorder %s12, 3
    %p97 = por %p95, %p96
    %p98 = scmp.ne.s32.totalorder %s90, %s93
    %p99 = scmp.eq.s32.totalorder %s12, 0
    %p100 = por %p98, %p99
    %p101 = scmp.ne.s32.totalorder %s90, %s93
    %p102 = scmp.eq.s32.totalorder %s17, 3
    %p103 = por %p101, %p102
    %p104 = scmp.ne.s32.totalorder %s93, %s94
    %p105 = scmp.eq.s32.totalorder %s17, 0
    %p106 = por %p104, %p105
    %p107 = scmp.ne.s32.totalorder %s93, %s94
    %p108 = scmp.eq.s32.totalorder %s18, 3
    %p109 = por %p107, %p108
    %p111 = scmp.ne.s32.totalorder %s94, %s110
    %p112 = scmp.eq.s32.totalorder %s18, 0
    %p113 = por %p111, %p112
    %s114 = ssub.s32 %s20, %s27
    %p115 = scmp.eq.s32.totalorder %s114, 0
    %s117 = sadd.s32 %s116, 1
    %s118 = scalar_select %p115, %s116, %s117
    %p121 = pneg %p115
    %p122 = scmp.eq.s32.totalorder %s12, 3
    %p123 = por %p121, %p122
    %p124 = scmp.ne.s32.totalorder %s116, %s119
    %p125 = scmp.eq.s32.totalorder %s12, 0
    %p126 = por %p124, %p125
    %p127 = scmp.ne.s32.totalorder %s116, %s119
    %p128 = scmp.eq.s32.totalorder %s17, 3
    %p129 = por %p127, %p128
    %p130 = scmp.ne.s32.totalorder %s119, %s120
    %p131 = scmp.eq.s32.totalorder %s17, 0
    %p132 = por %p130, %p131
    %p133 = scmp.ne.s32.totalorder %s119, %s120
    %p134 = scmp.eq.s32.totalorder %s18, 3
    %p135 = por %p133, %p134
    %p137 = scmp.ne.s32.totalorder %s120, %s136
    %p138 = scmp.eq.s32.totalorder %s18, 0
    %p139 = por %p137, %p138
    %s140 = ssub.s32 %s19, %s31
    %s141 = ssub.s32 %s20, %s27
    %s142 = sor.u32 %s140, %s141
    %p143 = scmp.eq.s32.totalorder %s142, 0
    %s145 = sadd.s32 %s144, 1
    %s146 = scalar_select %p143, %s144, %s145
    %p149 = pneg %p143
    %p150 = scmp.eq.s32.totalorder %s12, 3
    %p151 = por %p149, %p150
    %p152 = scmp.ne.s32.totalorder %s144, %s147
    %p153 = scmp.eq.s32.totalorder %s12, 0
    %p154 = por %p152, %p153
    %p155 = scmp.ne.s32.totalorder %s144, %s147
    %p156 = scmp.eq.s32.totalorder %s17, 3
    %p157 = por %p155, %p156
    %p158 = scmp.ne.s32.totalorder %s147, %s148
    %p159 = scmp.eq.s32.totalorder %s17, 0
    %p160 = por %p158, %p159
    %p161 = scmp.ne.s32.totalorder %s147, %s148
    %p162 = scmp.eq.s32.totalorder %s18, 3
    %p163 = por %p161, %p162
    %p165 = scmp.ne.s32.totalorder %s148, %s164
    %p166 = scmp.eq.s32.totalorder %s18, 0
    %p167 = por %p165, %p166
    %s168 = ssub.s32 %s19, %s31
    %p169 = scmp.eq.s32.totalorder %s168, 0
    %s171 = sadd.s32 %s170, 1
    %s172 = scalar_select %p169, %s170, %s171
    %p175 = pneg %p169
    %p176 = scmp.eq.s32.totalorder %s12, 3
    %p177 = por %p175, %p176
    %p178 = scmp.ne.s32.totalorder %s170, %s173
    %p179 = scmp.eq.s32.totalorder %s12, 0
    %p180 = por %p178, %p179
    %p181 = scmp.ne.s32.totalorder %s170, %s173
    %p182 = scmp.eq.s32.totalorder %s17, 3
    %p183 = por %p181, %p182
    %p184 = scmp.ne.s32.totalorder %s173, %s174
    %p185 = scmp.eq.s32.totalorder %s17, 0
    %p186 = por %p184, %p185
    %p187 = scmp.ne.s32.totalorder %s173, %s174
    %p188 = scmp.eq.s32.totalorder %s18, 3
    %p189 = por %p187, %p188
    %p191 = scmp.ne.s32.totalorder %s174, %s190
    %p192 = scmp.eq.s32.totalorder %s18, 0
    %p193 = por %p191, %p192
    %p194 = scmp.le.s32.totalorder 1, %s12
    %p195 = scmp.lt.s32.totalorder %s12, 5
    %p196 = pnand %p194, %p195
    %p197 = pneg %p196
    // Predicated region
    $region9: #{_forward_impl.3} parent=5 // pred_check
      _
    $region10: #{_forward_impl.3} parent=5 // pred_check_branch
      %199 = sbr.rel (%p196) target = $region12
    $region11: #{_forward_impl.3} parent=5 // pred_region
      %s200 = ssub.s32 %s12, 1
      // Predicated region
      $region13: #{_forward_impl.3} parent=11 // pred_check
        %p201 = pneg %p132
      $region14: #{_forward_impl.3} parent=11 // pred_check_branch
        %203 = sbr.rel (%p201) target = $region16
      $region15: #{_forward_impl.3} parent=11 // pred_region
        %s204 = smul.u32 16, %s22
        %p205 = scmp.lt.s32.totalorder %s204, 15
        %s206 = scalar_select %p205, %s204, 15
        %s207 = smul.addr %s206, 8
        %s208 = scalar_lea.vmem %s3, %s207
        %s209 = smul.u32 16, %s22
      $region16: #{_forward_impl.3} parent=11 // pred_fallthru
        _
    $region12: #{_forward_impl.3} parent=5 // pred_fallthru
      _
    %p210 = scmp.lt.s32.totalorder %s12, 4
    // Predicated region
    $region17: #{_forward_impl.3} parent=5 // pred_check
      %p211 = pneg %p210
    $region18: #{_forward_impl.3} parent=5 // pred_check_branch
      %213 = sbr.rel (%p211) target = $region20
    $region19: #{_forward_impl.3} parent=5 // pred_region
      // Predicated region
      $region21: #{_forward_impl.3} parent=19 // pred_check
        %p214 = pneg %p44
      $region22: #{_forward_impl.3} parent=19 // pred_check_branch
        %216 = sbr.rel (%p214) target = $region24
      $region23: #{_forward_impl.3} parent=19 // pred_region
        %p217 = scmp.lt.s32.totalorder %s19, 3
        %s218 = scalar_select %p217, %s19, 3
        %s219 = smul.addr %s218, 2
        %s220 = smul.addr %s219, 4
        %s221 = scalar_lea.vmem %s0, %s220
      $region24: #{_forward_impl.3} parent=19 // pred_fallthru
        _
      // Predicated region
      $region25: #{_forward_impl.3} parent=19 // pred_check
        %p222 = pneg %p72
      $region26: #{_forward_impl.3} parent=19 // pred_check_branch
        %224 = sbr.rel (%p222) target = $region28
      $region27: #{_forward_impl.3} parent=19 // pred_region
        %p225 = scmp.lt.s32.totalorder %s19, 3
        %s226 = scalar_select %p225, %s19, 3
        %p227 = scmp.lt.s32.totalorder %s20, 0
        %s228 = scalar_select %p227, %s20, 0
        %s229 = smul.addr %s226, 16
        %s230 = sadd.s32 %s228, %s229
        %s231 = smul.addr %s230, 4
        %s232 = scalar_lea.vmem %s1, %s231
      $region28: #{_forward_impl.3} parent=19 // pred_fallthru
        _
      // Predicated region
      $region29: #{_forward_impl.3} parent=19 // pred_check
        %p233 = pneg %p100
      $region30: #{_forward_impl.3} parent=19 // pred_check_branch
        %235 = sbr.rel (%p233) target = $region32
      $region31: #{_forward_impl.3} parent=19 // pred_region
        %p236 = scmp.lt.s32.totalorder %s19, 3
        %s237 = scalar_select %p236, %s19, 3
        %p238 = scmp.lt.s32.totalorder %s20, 0
        %s239 = scalar_select %p238, %s20, 0
        %s240 = smul.addr %s237, 16
        %s241 = sadd.s32 %s239, %s240
        %s242 = smul.addr %s241, 4
        %s243 = scalar_lea.vmem %s2, %s242
      $region32: #{_forward_impl.3} parent=19 // pred_fallthru
        _
    $region20: #{_forward_impl.3} parent=5 // pred_fallthru
      _
    %p244 = scmp.le.s32.totalorder 1, %s12
    %p245 = scmp.lt.s32.totalorder %s12, 5
    %p246 = pnand %p244, %p245
    %p247 = pneg %p246
    // Predicated region
    $region33: #{_forward_impl.3} parent=5 // pred_check
      _
    $region34: #{_forward_impl.3} parent=5 // pred_check_branch
      %249 = sbr.rel (%p246) target = $region36
    $region35: #{_forward_impl.3} parent=5 // pred_region
      %s250 = ssub.s32 %s12, 1
      %p251 = scmp.lt.s32.totalorder %s21, 3
      %s252 = scalar_select %p251, %s21, 3
      %s253 = smul.addr %s252, 2
      %s254 = smul.addr %s253, 4
      %s255 = scalar_lea.vmem %s0, %s254
      %p256 = pneg %p50
      %p257 = pneg %p47
      %p258 = scmp.lt.s32.totalorder %s21, 3
      %s259 = scalar_select %p258, %s21, 3
      %p260 = scmp.lt.s32.totalorder %s22, 0
      %s261 = scalar_select %p260, %s22, 0
      %s262 = smul.addr %s259, 16
      %s263 = sadd.s32 %s261, %s262
      %s264 = smul.addr %s263, 4
      %s265 = scalar_lea.vmem %s1, %s264
      %p266 = pneg %p78
      %p267 = pneg %p75
      %p268 = scmp.lt.s32.totalorder %s21, 3
      %s269 = scalar_select %p268, %s21, 3
      %p270 = scmp.lt.s32.totalorder %s22, 0
      %s271 = scalar_select %p270, %s22, 0
      %s272 = smul.addr %s269, 16
      %s273 = sadd.s32 %s271, %s272
      %s274 = smul.addr %s273, 4
      %s275 = scalar_lea.vmem %s2, %s274
      %p276 = pneg %p106
      %p277 = pneg %p103
      %s278 = smul.u32 16, %s22
      %p279 = scmp.lt.s32.totalorder %s278, 15
      %s280 = scalar_select %p279, %s278, 15
      %s281 = smul.addr %s280, 8
      %s282 = scalar_lea.vmem %s3, %s281
      %p283 = pneg %p132
      %p284 = pneg %p129
      %p285 = pneg %p160
      %p286 = pneg %p157
      %p287 = scmp.lt.s32.totalorder %s21, 3
      %s288 = scalar_select %p287, %s21, 3
      %p289 = scmp.lt.s32.totalorder %s22, 0
      %s290 = scalar_select %p289, %s22, 0
      %s291 = sadd.s32 %s290, %s288
      %s292 = smul.addr %s291, 8
      %s293 = scalar_lea.vmem %s4, %s292
      %p294 = pneg %p186
      %p295 = pneg %p183
      %p296 = scmp.lt.s32.totalorder %s21, 3
      %s297 = scalar_select %p296, %s21, 3
      %s298 = smul.addr %s297, 8
      %s299 = scalar_lea.vmem %s5, %s298
      %p300 = scmp.lt.s32.totalorder %s21, 3
      %s301 = scalar_select %p300, %s21, 3
      %s302 = smul.addr %s301, 2
      %s303 = smul.addr %s302, 4
      %s304 = scalar_lea.vmem %s0, %s303
      %p305 = scmp.lt.s32.totalorder %s21, 3
      %s306 = scalar_select %p305, %s21, 3
      %p307 = scmp.lt.s32.totalorder %s22, 0
      %s308 = scalar_select %p307, %s22, 0
      %s309 = smul.addr %s306, 16
      %s310 = sadd.s32 %s308, %s309
      %s311 = smul.addr %s310, 4
      %s312 = scalar_lea.vmem %s1, %s311
      %p313 = scmp.lt.s32.totalorder %s21, 3
      %s314 = scalar_select %p313, %s21, 3
      %p315 = scmp.lt.s32.totalorder %s22, 0
      %s316 = scalar_select %p315, %s22, 0
      %s317 = smul.addr %s314, 16
      %s318 = sadd.s32 %s316, %s317
      %s319 = smul.addr %s318, 4
      %s320 = scalar_lea.vmem %s2, %s319
      %s321 = smul.u32 16, %s22
      %p322 = scmp.lt.s32.totalorder %s321, 15
      %s323 = scalar_select %p322, %s321, 15
      %s324 = smul.addr %s323, 8
      %s325 = scalar_lea.vmem %s3, %s324
      %s326 = smul.u32 16, %s22
      %p327 = scmp.lt.s32.totalorder %s21, 3
      %s328 = scalar_select %p327, %s21, 3
      %p329 = scmp.lt.s32.totalorder %s22, 0
      %s330 = scalar_select %p329, %s22, 0
      %s331 = sadd.s32 %s330, %s328
      %s332 = smul.addr %s331, 8
      %s333 = scalar_lea.vmem %s4, %s332
      %p334 = scmp.lt.s32.totalorder %s21, 3
      %s335 = scalar_select %p334, %s21, 3
      %s336 = smul.addr %s335, 8
      %s337 = scalar_lea.vmem %s5, %s336
      %v338 = vld [vmem:[%s304] sm:$0xf]
      %v339 = vld [vmem:[%s304 + $0x4] sm:$0xf]
      %v340 = vld [vmem:[%s312] sm:$0xf]
      %v341 = vld [vmem:[%s312 + $0x4] sm:$0xf]
      %v342 = vld [vmem:[%s312 + $0x8] sm:$0xf]
      %v343 = vld [vmem:[%s312 + $0xc] sm:$0xf]
      %v344 = vld [vmem:[%s312 + $0x10] sm:$0xf]
      %v345 = vld [vmem:[%s312 + $0x14] sm:$0xf]
      %v346 = vld [vmem:[%s312 + $0x18] sm:$0xf]
      %v347 = vld [vmem:[%s312 + $0x1c] sm:$0xf]
      %v348 = vld [vmem:[%s312 + $0x20] sm:$0xf]
      %v349 = vld [vmem:[%s312 + $0x24] sm:$0xf]
      %v350 = vld [vmem:[%s312 + $0x28] sm:$0xf]
      %v351 = vld [vmem:[%s312 + $0x2c] sm:$0xf]
      %v352 = vld [vmem:[%s312 + $0x30] sm:$0xf]
      %v353 = vld [vmem:[%s312 + $0x34] sm:$0xf]
      %v354 = vld [vmem:[%s312 + $0x38] sm:$0xf]
      %v355 = vld [vmem:[%s312 + $0x3c] sm:$0xf]
      %v356 = vld [vmem:[%s320] sm:$0xf]
      %v357 = vld [vmem:[%s320 + $0x4] sm:$0xf]
      %v358 = vld [vmem:[%s320 + $0x8] sm:$0xf]
      %v359 = vld [vmem:[%s320 + $0xc] sm:$0xf]
      %v360 = vld [vmem:[%s320 + $0x10] sm:$0xf]
      %v361 = vld [vmem:[%s320 + $0x14] sm:$0xf]
      %v362 = vld [vmem:[%s320 + $0x18] sm:$0xf]
      %v363 = vld [vmem:[%s320 + $0x1c] sm:$0xf]
      %v364 = vld [vmem:[%s320 + $0x20] sm:$0xf]
      %v365 = vld [vmem:[%s320 + $0x24] sm:$0xf]
      %v366 = vld [vmem:[%s320 + $0x28] sm:$0xf]
      %v367 = vld [vmem:[%s320 + $0x2c] sm:$0xf]
      %v368 = vld [vmem:[%s320 + $0x30] sm:$0xf]
      %v369 = vld [vmem:[%s320 + $0x34] sm:$0xf]
      %v370 = vld [vmem:[%s320 + $0x38] sm:$0xf]
      %v371 = vld [vmem:[%s320 + $0x3c] sm:$0xf]
      %v374 = vunpack.c.l.b16 %v338
      %v375 = vunpack.c.l.b16 %v339
      %v376 = vpack.c.b16 %v375, %v374
      %v394 = vunpack.c.l.b16 %v340
      %v395 = vunpack.c.l.b16 %v341
      %v396 = vunpack.c.l.b16 %v342
      %v397 = vunpack.c.l.b16 %v343
      %v398 = vunpack.c.l.b16 %v344
      %v399 = vunpack.c.l.b16 %v345
      %v400 = vunpack.c.l.b16 %v346
      %v401 = vunpack.c.l.b16 %v347
      %v402 = vunpack.c.l.b16 %v348
      %v403 = vunpack.c.l.b16 %v349
      %v404 = vunpack.c.l.b16 %v350
      %v405 = vunpack.c.l.b16 %v351
      %v406 = vunpack.c.l.b16 %v352
      %v407 = vunpack.c.l.b16 %v353
      %v408 = vunpack.c.l.b16 %v354
      %v409 = vunpack.c.l.b16 %v355
      %v410 = vpack.c.b16 %v395, %v394
      %v411 = vpack.c.b16 %v397, %v396
      %v412 = vpack.c.b16 %v399, %v398
      %v413 = vpack.c.b16 %v401, %v400
      %v414 = vpack.c.b16 %v403, %v402
      %v415 = vpack.c.b16 %v405, %v404
      %v416 = vpack.c.b16 %v407, %v406
      %v417 = vpack.c.b16 %v409, %v408
      %426 = vmatpush.bf16.msra.mxu0 %v417
      %427 = vmatpush.bf16.msra.mxu0 %v416
      %428 = vmatpush.bf16.msra.mxu0 %v415
      %429 = vmatpush.bf16.msra.mxu0 %v414
      %430 = vmatpush.bf16.msra.mxu0 %v413
      %431 = vmatpush.bf16.msra.mxu0 %v412
      %432 = vmatpush.bf16.msra.mxu0 %v411
      %433 = vmatpush.bf16.msra.mxu0 %v410
      %434 = vmatmul.bf16.gmra.mxu0 %v376
      %v435 = vpop.f32.mrf.mxu0
      %v436 = vadd.f32 0.0, %v435
      %v437 = vpop.f32.mrf.mxu0
      %v438 = vadd.f32 0.0, %v437
      %439 = vdwg.mxu0
      %v456 = vunpack.c.l.b16 %v356
      %v457 = vunpack.c.l.b16 %v357
      %v458 = vunpack.c.l.b16 %v358
      %v459 = vunpack.c.l.b16 %v359
      %v460 = vunpack.c.l.b16 %v360
      %v461 = vunpack.c.l.b16 %v361
      %v462 = vunpack.c.l.b16 %v362
      %v463 = vunpack.c.l.b16 %v363
      %v464 = vunpack.c.l.b16 %v364
      %v465 = vunpack.c.l.b16 %v365
      %v466 = vunpack.c.l.b16 %v366
      %v467 = vunpack.c.l.b16 %v367
      %v468 = vunpack.c.l.b16 %v368
      %v469 = vunpack.c.l.b16 %v369
      %v470 = vunpack.c.l.b16 %v370
      %v471 = vunpack.c.l.b16 %v371
      %v472 = vpack.c.b16 %v457, %v456
      %v473 = vpack.c.b16 %v459, %v458
      %v474 = vpack.c.b16 %v461, %v460
      %v475 = vpack.c.b16 %v463, %v462
      %v476 = vpack.c.b16 %v465, %v464
      %v477 = vpack.c.b16 %v467, %v466
      %v478 = vpack.c.b16 %v469, %v468
      %v479 = vpack.c.b16 %v471, %v470
      %488 = vmatpush.bf16.msra.mxu0 %v479
      %489 = vmatpush.bf16.msra.mxu0 %v478
      %490 = vmatpush.bf16.msra.mxu0 %v477
      %491 = vmatpush.bf16.msra.mxu0 %v476
      %492 = vmatpush.bf16.msra.mxu0 %v475
      %493 = vmatpush.bf16.msra.mxu0 %v474
      %494 = vmatpush.bf16.msra.mxu0 %v473
      %495 = vmatpush.bf16.msra.mxu0 %v472
      %496 = vmatmul.bf16.gmra.mxu0 %v376
      %v497 = vpop.f32.mrf.mxu0
      %v498 = vadd.f32 0.0, %v497
      %v499 = vpop.f32.mrf.mxu0
      %v500 = vadd.f32 0.0, %v499
      %501 = vdwg.mxu0
      %v502 = vsub.f32 %v436, %v500
      %v503 = vadd.f32 %v498, %v438
      %v504 = vmul.f32 %v502, %v502
      %v505 = vmul.f32 %v503, %v503
      %v506 = vadd.f32 %v504, %v505
      %507 = vst [vmem:[%s333] sm:$0xff] %v506
      %p508 = scmp.eq.s32.totalorder %s22, 0
      // Predicated region
      $region37: #{_forward_impl.3} parent=35 // pred_check
        %p509 = pneg %p508
      $region38: #{_forward_impl.3} parent=35 // pred_check_branch
        %511 = sbr.rel (%p509) target = $region40
      $region39: #{_forward_impl.3} parent=35 // pred_region
        %512 = vst [vmem:[%s337] sm:$0xff] 0.0
      $region40: #{_forward_impl.3} parent=35 // pred_fallthru
        _
      %v513 = vld [vmem:[%s337] sm:$0xff]
      %v514 = vld [vmem:[%s325] sm:$0xff]
      %v515 = vld [vmem:[%s325 + $0x8] sm:$0xff]
      %v516 = vld [vmem:[%s325 + $0x10] sm:$0xff]
      %v517 = vld [vmem:[%s325 + $0x18] sm:$0xff]
      %v518 = vld [vmem:[%s325 + $0x20] sm:$0xff]
      %v519 = vld [vmem:[%s325 + $0x28] sm:$0xff]
      %v520 = vld [vmem:[%s325 + $0x30] sm:$0xff]
      %v521 = vld [vmem:[%s325 + $0x38] sm:$0xff]
      %v522 = vld [vmem:[%s325 + $0x40] sm:$0xff]
      %v523 = vld [vmem:[%s325 + $0x48] sm:$0xff]
      %v524 = vld [vmem:[%s325 + $0x50] sm:$0xff]
      %v525 = vld [vmem:[%s325 + $0x58] sm:$0xff]
      %v526 = vld [vmem:[%s325 + $0x60] sm:$0xff]
      %v527 = vld [vmem:[%s325 + $0x68] sm:$0xff]
      %v528 = vld [vmem:[%s325 + $0x70] sm:$0xff]
      %v529 = vld [vmem:[%s325 + $0x78] sm:$0xff]
      %530 = vmatpush.msra.mxu0 %v529
      %531 = vmatpush.msra.mxu0 %v528
      %532 = vmatpush.msra.mxu0 %v527
      %533 = vmatpush.msra.mxu0 %v526
      %534 = vmatpush.msra.mxu0 %v525
      %535 = vmatpush.msra.mxu0 %v524
      %536 = vmatpush.msra.mxu0 %v523
      %537 = vmatpush.msra.mxu0 %v522
      %538 = vmatpush.msra.mxu0 %v521
      %539 = vmatpush.msra.mxu0 %v520
      %540 = vmatpush.msra.mxu0 %v519
      %541 = vmatpush.msra.mxu0 %v518
      %542 = vmatpush.msra.mxu0 %v517
      %543 = vmatpush.msra.mxu0 %v516
      %544 = vmatpush.msra.mxu0 %v515
      %545 = vmatpush.msra.mxu0 %v514
      %546 = vmatmul.f32.gmra.mxu0 %v506
      %v547 = vpop.f32.mrf.mxu0
      %v548 = vadd.f32 0.0, %v547
      %549 = vdwg.mxu0
      %v550 = vadd.f32 %v513, %v548
      %551 = vst [vmem:[%s337] sm:$0xff] %v550
      %p552 = scmp.lt.s32.totalorder %s21, 3
      %s553 = scalar_select %p552, %s21, 3
      %p554 = scmp.lt.s32.totalorder %s22, 0
      %s555 = scalar_select %p554, %s22, 0
      %s556 = sadd.s32 %s555, %s553
      %s557 = smul.addr %s556, 8
      %s558 = scalar_lea.vmem %s4, %s557
      %p559 = scmp.lt.s32.totalorder %s21, 3
      %s560 = scalar_select %p559, %s21, 3
      %s561 = smul.addr %s560, 8
      %s562 = scalar_lea.vmem %s5, %s561
      // Predicated region
      $region41: #{_forward_impl.3} parent=35 // pred_check
        %p563 = pneg %p157
      $region42: #{_forward_impl.3} parent=35 // pred_check_branch
        %565 = sbr.rel (%p563) target = $region44
      $region43: #{_forward_impl.3} parent=35 // pred_region
        _
      $region44: #{_forward_impl.3} parent=35 // pred_fallthru
        _
      // Predicated region
      $region45: #{_forward_impl.3} parent=35 // pred_check
        %p566 = pneg %p183
      $region46: #{_forward_impl.3} parent=35 // pred_check_branch
        %568 = sbr.rel (%p566) target = $region48
      $region47: #{_forward_impl.3} parent=35 // pred_region
        _
      $region48: #{_forward_impl.3} parent=35 // pred_fallthru
        _
    $region36: #{_forward_impl.3} parent=5 // pred_fallthru
      _
    %p569 = scmp.le.s32.totalorder 2, %s12
    // Predicated region
    $region49: #{_forward_impl.3} parent=5 // pred_check
      %p570 = pneg %p569
    $region50: #{_forward_impl.3} parent=5 // pred_check_branch
      %572 = sbr.rel (%p570) target = $region52
    $region51: #{_forward_impl.3} parent=5 // pred_region
      %s573 = ssub.s32 %s12, 2
      // Predicated region
      $region53: #{_forward_impl.3} parent=51 // pred_check
        %p574 = pneg %p163
      $region54: #{_forward_impl.3} parent=51 // pred_check_branch
        %576 = sbr.rel (%p574) target = $region56
      $region55: #{_forward_impl.3} parent=51 // pred_region
        %p577 = scmp.lt.s32.totalorder %s23, 3
        %s578 = scalar_select %p577, %s23, 3
        %p579 = scmp.lt.s32.totalorder %s24, 0
        %s580 = scalar_select %p579, %s24, 0
        %s581 = sadd.s32 %s580, %s578
        %s582 = smul.addr %s581, 8
        %s583 = scalar_lea.vmem %s4, %s582
      $region56: #{_forward_impl.3} parent=51 // pred_fallthru
        _
      // Predicated region
      $region57: #{_forward_impl.3} parent=51 // pred_check
        %p584 = pneg %p189
      $region58: #{_forward_impl.3} parent=51 // pred_check_branch
        %586 = sbr.rel (%p584) target = $region60
      $region59: #{_forward_impl.3} parent=51 // pred_region
        %p587 = scmp.lt.s32.totalorder %s23, 3
        %s588 = scalar_select %p587, %s23, 3
        %s589 = smul.addr %s588, 8
        %s590 = scalar_lea.vmem %s5, %s589
      $region60: #{_forward_impl.3} parent=51 // pred_fallthru
        _
    $region52: #{_forward_impl.3} parent=5 // pred_fallthru
      _
  $region6: #{_forward_impl.3} parent=0 // loop_footer
    %s16 = sadd.s32 1, %s12
  $region7: #{_forward_impl.3} parent=0 // loop_footer_branch
    %11 = sbr.rel target = $region3
  $region8: #{_forward_impl.3} parent=0 // loop_exit
    _

// kernel: div.21
$region0: #{div.21}
  #allocation0 [shape = 's32[1]{0}', space=sflag, size = 0x4, scoped, tag = 'scoped memory for div.21']
  %s0 = inlined_call_operand.vmem [shape: f32[2,4], index: 0, kind: input, shape index: {}]
  %s1 = inlined_call_operand.vmem [shape: f32[2,4], index: 1, kind: input, shape index: {}]
  %s2 = inlined_call_operand.vmem [shape: f32[2,4], index: 2, kind: output, shape index: {}]
  %v3 = vld [vmem:[%s0] sm:$0x3]
  %v4 = vld [vmem:[%s1] sm:$0x3]
  %5 = xla_tuple %v3, %v4
  %6 = xla_tuple %5
  %v7 = vrcp.pop %v4
  %v8 = vmul.f32 %v4, %v7
  %v9 = vsub.f32 1.0, %v8
  %v10 = vmul.f32 %v7, %v9
  %v11 = vadd.f32 %v7, %v10
  %vm12 = vweird.f32 %v4
  %vm13 = vweird.f32 %v7
  %vm14 = vmor %vm12, %vm13
  %v15 = vsel %vm14, %v7, %v11
  %v16 = vand.u32 2147483647, %v4
  %vm17 = vcmp.eq.f32.partialorder %v16, 8.507059e+37
  %v18 = vand.u32 %v4, 2147483648
  %v19 = vor.u32 1.1754944e-38, %v18
  %v20 = vsel %vm17, %v19, %v15
  %v21 = vmul.f32 %v3, %v20
  %22 = xla_tuple %v21
  %23 = vst [vmem:[%s2] sm:$0x3] %v21

// kernel: _forward_impl.4
$region0: #{_forward_impl.4}
  #allocation0 [shape = 'u32[]', space=smem, size = 0x4, offset = 0x4, fixed_abs, tag = 'smem constant byte address 0x4 - core index']
  #allocation1 [shape = 'u32[72,128]{1,0:T(1,128)}', space=vmem, size = 0x9000, scoped, tag = 'internal scratch']
  %s0 = inlined_call_operand.vmem [shape: bf16[2,16,128], index: 0, kind: input, shape index: {}]
  %s1 = inlined_call_operand.vmem [shape: bf16[2,128,256], index: 1, kind: input, shape index: {}]
  %s2 = inlined_call_operand.vmem [shape: bf16[2,128,256], index: 2, kind: input, shape index: {}]
  %s3 = inlined_call_operand.vmem [shape: f32[256,128], index: 3, kind: input, shape index: {}]
  %s4 = inlined_call_operand.vmem [shape: f32[2,8,256], index: 4, kind: output, shape index: {0}]
  %s5 = inlined_call_operand.vmem [shape: f32[2,8,128], index: 5, kind: output, shape index: {1}]
  %6 = xla_tuple %s4, %s5
  %s7 = sld [smem:[#allocation0]]
  $region61: #{_forward_impl.4} parent=0
    _
  %s9 = ssub.s32 1, %s7
  %s10 = scalar_select 0, %s9, %s7
  loop: start=0, step=1, limit=4
  $region2: #{_forward_impl.4} parent=0 // loop_pre_header
    _
  $region3: #{_forward_impl.4} parent=0 // loop_header
    %s12 = sphi 0, %s16
    %p13 = scmp.ge.s32.totalorder %s12, 4
    %s19 = sphi 0, %s31
    %s20 = sphi 0, %s27
    %s21 = sphi 0, %s19
    %s22 = sphi 0, %s20
    %s23 = sphi 0, %s21
    %s24 = sphi 0, %s22
    %s34 = sphi 0, %s36
    %s37 = sphi 0, %s34
    %s38 = sphi 0, %s37
    %s54 = sphi 0, %s38
    %s62 = sphi 0, %s64
    %s65 = sphi 0, %s62
    %s66 = sphi 0, %s65
    %s82 = sphi 0, %s66
    %s90 = sphi 0, %s92
    %s93 = sphi 0, %s90
    %s94 = sphi 0, %s93
    %s110 = sphi 0, %s94
    %s116 = sphi 0, %s118
    %s119 = sphi 0, %s116
    %s120 = sphi 0, %s119
    %s136 = sphi 0, %s120
    %s144 = sphi 0, %s146
    %s147 = sphi 0, %s144
    %s148 = sphi 0, %s147
    %s164 = sphi 0, %s148
    %s170 = sphi 0, %s172
    %s173 = sphi 0, %s170
    %s174 = sphi 0, %s173
    %s190 = sphi 0, %s174
  $region4: #{_forward_impl.4} parent=0 // loop_header_branch
    %15 = sbr.rel (%p13) target = $region8
  $region5: #{_forward_impl.4} parent=0 // loop_body
    %s17 = ssub.s32 %s12, 1
    %s18 = ssub.s32 %s12, 2
    %s25 = sadd.s32 1, %s20
    %p26 = scmp.ge.s32.totalorder %s25, 1
    %s27 = scalar_select %p26, 0, %s25
    %s28 = sadd.s32 1, %s19
    %s29 = scalar_select %p26, %s28, %s19
    %p30 = scmp.ge.s32.totalorder %s29, 2
    %s31 = scalar_select %p30, 0, %s29
    %s32 = ssub.s32 %s19, %s31
    %p33 = scmp.eq.s32.totalorder %s32, 0
    %s35 = sadd.s32 %s34, 1
    %s36 = scalar_select %p33, %s34, %s35
    %p39 = pneg %p33
    %p40 = scmp.eq.s32.totalorder %s12, 1
    %p41 = por %p39, %p40
    %p42 = scmp.ne.s32.totalorder %s34, %s37
    %p43 = scmp.eq.s32.totalorder %s12, 0
    %p44 = por %p42, %p43
    %p45 = scmp.ne.s32.totalorder %s34, %s37
    %p46 = scmp.eq.s32.totalorder %s17, 1
    %p47 = por %p45, %p46
    %p48 = scmp.ne.s32.totalorder %s37, %s38
    %p49 = scmp.eq.s32.totalorder %s17, 0
    %p50 = por %p48, %p49
    %p51 = scmp.ne.s32.totalorder %s37, %s38
    %p52 = scmp.eq.s32.totalorder %s18, 1
    %p53 = por %p51, %p52
    %p55 = scmp.ne.s32.totalorder %s38, %s54
    %p56 = scmp.eq.s32.totalorder %s18, 0
    %p57 = por %p55, %p56
    %s58 = ssub.s32 %s19, %s31
    %s59 = ssub.s32 %s20, %s27
    %s60 = sor.u32 %s58, %s59
    %p61 = scmp.eq.s32.totalorder %s60, 0
    %s63 = sadd.s32 %s62, 1
    %s64 = scalar_select %p61, %s62, %s63
    %p67 = pneg %p61
    %p68 = scmp.eq.s32.totalorder %s12, 1
    %p69 = por %p67, %p68
    %p70 = scmp.ne.s32.totalorder %s62, %s65
    %p71 = scmp.eq.s32.totalorder %s12, 0
    %p72 = por %p70, %p71
    %p73 = scmp.ne.s32.totalorder %s62, %s65
    %p74 = scmp.eq.s32.totalorder %s17, 1
    %p75 = por %p73, %p74
    %p76 = scmp.ne.s32.totalorder %s65, %s66
    %p77 = scmp.eq.s32.totalorder %s17, 0
    %p78 = por %p76, %p77
    %p79 = scmp.ne.s32.totalorder %s65, %s66
    %p80 = scmp.eq.s32.totalorder %s18, 1
    %p81 = por %p79, %p80
    %p83 = scmp.ne.s32.totalorder %s66, %s82
    %p84 = scmp.eq.s32.totalorder %s18, 0
    %p85 = por %p83, %p84
    %s86 = ssub.s32 %s19, %s31
    %s87 = ssub.s32 %s20, %s27
    %s88 = sor.u32 %s86, %s87
    %p89 = scmp.eq.s32.totalorder %s88, 0
    %s91 = sadd.s32 %s90, 1
    %s92 = scalar_select %p89, %s90, %s91
    %p95 = pneg %p89
    %p96 = scmp.eq.s32.totalorder %s12, 1
    %p97 = por %p95, %p96
    %p98 = scmp.ne.s32.totalorder %s90, %s93
    %p99 = scmp.eq.s32.totalorder %s12, 0
    %p100 = por %p98, %p99
    %p101 = scmp.ne.s32.totalorder %s90, %s93
    %p102 = scmp.eq.s32.totalorder %s17, 1
    %p103 = por %p101, %p102
    %p104 = scmp.ne.s32.totalorder %s93, %s94
    %p105 = scmp.eq.s32.totalorder %s17, 0
    %p106 = por %p104, %p105
    %p107 = scmp.ne.s32.totalorder %s93, %s94
    %p108 = scmp.eq.s32.totalorder %s18, 1
    %p109 = por %p107, %p108
    %p111 = scmp.ne.s32.totalorder %s94, %s110
    %p112 = scmp.eq.s32.totalorder %s18, 0
    %p113 = por %p111, %p112
    %s114 = ssub.s32 %s20, %s27
    %p115 = scmp.eq.s32.totalorder %s114, 0
    %s117 = sadd.s32 %s116, 1
    %s118 = scalar_select %p115, %s116, %s117
    %p121 = pneg %p115
    %p122 = scmp.eq.s32.totalorder %s12, 1
    %p123 = por %p121, %p122
    %p124 = scmp.ne.s32.totalorder %s116, %s119
    %p125 = scmp.eq.s32.totalorder %s12, 0
    %p126 = por %p124, %p125
    %p127 = scmp.ne.s32.totalorder %s116, %s119
    %p128 = scmp.eq.s32.totalorder %s17, 1
    %p129 = por %p127, %p128
    %p130 = scmp.ne.s32.totalorder %s119, %s120
    %p131 = scmp.eq.s32.totalorder %s17, 0
    %p132 = por %p130, %p131
    %p133 = scmp.ne.s32.totalorder %s119, %s120
    %p134 = scmp.eq.s32.totalorder %s18, 1
    %p135 = por %p133, %p134
    %p137 = scmp.ne.s32.totalorder %s120, %s136
    %p138 = scmp.eq.s32.totalorder %s18, 0
    %p139 = por %p137, %p138
    %s140 = ssub.s32 %s19, %s31
    %s141 = ssub.s32 %s20, %s27
    %s142 = sor.u32 %s140, %s141
    %p143 = scmp.eq.s32.totalorder %s142, 0
    %s145 = sadd.s32 %s144, 1
    %s146 = scalar_select %p143, %s144, %s145
    %p149 = pneg %p143
    %p150 = scmp.eq.s32.totalorder %s12, 1
    %p151 = por %p149, %p150
    %p152 = scmp.ne.s32.totalorder %s144, %s147
    %p153 = scmp.eq.s32.totalorder %s12, 0
    %p154 = por %p152, %p153
    %p155 = scmp.ne.s32.totalorder %s144, %s147
    %p156 = scmp.eq.s32.totalorder %s17, 1
    %p157 = por %p155, %p156
    %p158 = scmp.ne.s32.totalorder %s147, %s148
    %p159 = scmp.eq.s32.totalorder %s17, 0
    %p160 = por %p158, %p159
    %p161 = scmp.ne.s32.totalorder %s147, %s148
    %p162 = scmp.eq.s32.totalorder %s18, 1
    %p163 = por %p161, %p162
    %p165 = scmp.ne.s32.totalorder %s148, %s164
    %p166 = scmp.eq.s32.totalorder %s18, 0
    %p167 = por %p165, %p166
    %s168 = ssub.s32 %s19, %s31
    %p169 = scmp.eq.s32.totalorder %s168, 0
    %s171 = sadd.s32 %s170, 1
    %s172 = scalar_select %p169, %s170, %s171
    %p175 = pneg %p169
    %p176 = scmp.eq.s32.totalorder %s12, 1
    %p177 = por %p175, %p176
    %p178 = scmp.ne.s32.totalorder %s170, %s173
    %p179 = scmp.eq.s32.totalorder %s12, 0
    %p180 = por %p178, %p179
    %p181 = scmp.ne.s32.totalorder %s170, %s173
    %p182 = scmp.eq.s32.totalorder %s17, 1
    %p183 = por %p181, %p182
    %p184 = scmp.ne.s32.totalorder %s173, %s174
    %p185 = scmp.eq.s32.totalorder %s17, 0
    %p186 = por %p184, %p185
    %p187 = scmp.ne.s32.totalorder %s173, %s174
    %p188 = scmp.eq.s32.totalorder %s18, 1
    %p189 = por %p187, %p188
    %p191 = scmp.ne.s32.totalorder %s174, %s190
    %p192 = scmp.eq.s32.totalorder %s18, 0
    %p193 = por %p191, %p192
    %p194 = scmp.le.s32.totalorder 1, %s12
    %p195 = scmp.lt.s32.totalorder %s12, 3
    %p196 = pnand %p194, %p195
    %p197 = pneg %p196
    // Predicated region
    $region9: #{_forward_impl.4} parent=5 // pred_check
      _
    $region10: #{_forward_impl.4} parent=5 // pred_check_branch
      %199 = sbr.rel (%p196) target = $region12
    $region11: #{_forward_impl.4} parent=5 // pred_region
      %s200 = ssub.s32 %s12, 1
      // Predicated region
      $region13: #{_forward_impl.4} parent=11 // pred_check
        %p201 = pneg %p132
      $region14: #{_forward_impl.4} parent=11 // pred_check_branch
        %203 = sbr.rel (%p201) target = $region16
      $region15: #{_forward_impl.4} parent=11 // pred_region
        %s204 = smul.u32 32, %s22
        %p205 = scmp.lt.s32.totalorder %s204, 31
        %s206 = scalar_select %p205, %s204, 31
        %s207 = smul.addr %s206, 8
        %s208 = scalar_lea.vmem %s3, %s207
        %s209 = smul.u32 32, %s22
      $region16: #{_forward_impl.4} parent=11 // pred_fallthru
        _
    $region12: #{_forward_impl.4} parent=5 // pred_fallthru
      _
    %p210 = scmp.lt.s32.totalorder %s12, 2
    // Predicated region
    $region17: #{_forward_impl.4} parent=5 // pred_check
      %p211 = pneg %p210
    $region18: #{_forward_impl.4} parent=5 // pred_check_branch
      %213 = sbr.rel (%p211) target = $region20
    $region19: #{_forward_impl.4} parent=5 // pred_region
      // Predicated region
      $region21: #{_forward_impl.4} parent=19 // pred_check
        %p214 = pneg %p44
      $region22: #{_forward_impl.4} parent=19 // pred_check_branch
        %216 = sbr.rel (%p214) target = $region24
      $region23: #{_forward_impl.4} parent=19 // pred_region
        %p217 = scmp.lt.s32.totalorder %s19, 1
        %s218 = scalar_select %p217, %s19, 1
        %s219 = smul.addr %s218, 2
        %s220 = smul.addr %s219, 4
        %s221 = scalar_lea.vmem %s0, %s220
      $region24: #{_forward_impl.4} parent=19 // pred_fallthru
        _
      // Predicated region
      $region25: #{_forward_impl.4} parent=19 // pred_check
        %p222 = pneg %p72
      $region26: #{_forward_impl.4} parent=19 // pred_check_branch
        %224 = sbr.rel (%p222) target = $region28
      $region27: #{_forward_impl.4} parent=19 // pred_region
        %s225 = smul.u32 2, %s20
        %p226 = scmp.lt.s32.totalorder %s19, 1
        %s227 = scalar_select %p226, %s19, 1
        %p228 = scmp.lt.s32.totalorder %s225, 1
        %s229 = scalar_select %p228, %s225, 1
        %s230 = smul.addr %s227, 32
        %s231 = sadd.s32 %s229, %s230
        %s232 = smul.addr %s231, 4
        %s233 = scalar_lea.vmem %s1, %s232
        %s234 = smul.u32 2, %s20
      $region28: #{_forward_impl.4} parent=19 // pred_fallthru
        _
      // Predicated region
      $region29: #{_forward_impl.4} parent=19 // pred_check
        %p235 = pneg %p100
      $region30: #{_forward_impl.4} parent=19 // pred_check_branch
        %237 = sbr.rel (%p235) target = $region32
      $region31: #{_forward_impl.4} parent=19 // pred_region
        %s238 = smul.u32 2, %s20
        %p239 = scmp.lt.s32.totalorder %s19, 1
        %s240 = scalar_select %p239, %s19, 1
        %p241 = scmp.lt.s32.totalorder %s238, 1
        %s242 = scalar_select %p241, %s238, 1
        %s243 = smul.addr %s240, 32
        %s244 = sadd.s32 %s242, %s243
        %s245 = smul.addr %s244, 4
        %s246 = scalar_lea.vmem %s2, %s245
        %s247 = smul.u32 2, %s20
      $region32: #{_forward_impl.4} parent=19 // pred_fallthru
        _
    $region20: #{_forward_impl.4} parent=5 // pred_fallthru
      _
    %p248 = scmp.le.s32.totalorder 1, %s12
    %p249 = scmp.lt.s32.totalorder %s12, 3
    %p250 = pnand %p248, %p249
    %p251 = pneg %p250
    // Predicated region
    $region33: #{_forward_impl.4} parent=5 // pred_check
      _
    $region34: #{_forward_impl.4} parent=5 // pred_check_branch
      %253 = sbr.rel (%p250) target = $region36
    $region35: #{_forward_impl.4} parent=5 // pred_region
      %s254 = ssub.s32 %s12, 1
      %p255 = scmp.lt.s32.totalorder %s21, 1
      %s256 = scalar_select %p255, %s21, 1
      %s257 = smul.addr %s256, 2
      %s258 = smul.addr %s257, 4
      %s259 = scalar_lea.vmem %s0, %s258
      %p260 = pneg %p50
      %p261 = pneg %p47
      %s262 = smul.u32 2, %s22
      %p263 = scmp.lt.s32.totalorder %s21, 1
      %s264 = scalar_select %p263, %s21, 1
      %p265 = scmp.lt.s32.totalorder %s262, 1
      %s266 = scalar_select %p265, %s262, 1
      %s267 = smul.addr %s264, 32
      %s268 = sadd.s32 %s266, %s267
      %s269 = smul.addr %s268, 4
      %s270 = scalar_lea.vmem %s1, %s269
      %p271 = pneg %p78
      %p272 = pneg %p75
      %s273 = smul.u32 2, %s22
      %p274 = scmp.lt.s32.totalorder %s21, 1
      %s275 = scalar_select %p274, %s21, 1
      %p276 = scmp.lt.s32.totalorder %s273, 1
      %s277 = scalar_select %p276, %s273, 1
      %s278 = smul.addr %s275, 32
      %s279 = sadd.s32 %s277, %s278
      %s280 = smul.addr %s279, 4
      %s281 = scalar_lea.vmem %s2, %s280
      %p282 = pneg %p106
      %p283 = pneg %p103
      %s284 = smul.u32 32, %s22
      %p285 = scmp.lt.s32.totalorder %s284, 31
      %s286 = scalar_select %p285, %s284, 31
      %s287 = smul.addr %s286, 8
      %s288 = scalar_lea.vmem %s3, %s287
      %p289 = pneg %p132
      %p290 = pneg %p129
      %p291 = pneg %p160
      %p292 = pneg %p157
      %s293 = smul.u32 2, %s22
      %p294 = scmp.lt.s32.totalorder %s21, 1
      %s295 = scalar_select %p294, %s21, 1
      %p296 = scmp.lt.s32.totalorder %s293, 1
      %s297 = scalar_select %p296, %s293, 1
      %s298 = smul.addr %s295, 2
      %s299 = sadd.s32 %s297, %s298
      %s300 = smul.addr %s299, 8
      %s301 = scalar_lea.vmem %s4, %s300
      %p302 = pneg %p186
      %p303 = pneg %p183
      %p304 = scmp.lt.s32.totalorder %s21, 1
      %s305 = scalar_select %p304, %s21, 1
      %s306 = smul.addr %s305, 8
      %s307 = scalar_lea.vmem %s5, %s306
      %p308 = scmp.lt.s32.totalorder %s21, 1
      %s309 = scalar_select %p308, %s21, 1
      %s310 = smul.addr %s309, 2
      %s311 = smul.addr %s310, 4
      %s312 = scalar_lea.vmem %s0, %s311
      %s313 = smul.u32 2, %s22
      %p314 = scmp.lt.s32.totalorder %s21, 1
      %s315 = scalar_select %p314, %s21, 1
      %p316 = scmp.lt.s32.totalorder %s313, 1
      %s317 = scalar_select %p316, %s313, 1
      %s318 = smul.addr %s315, 32
      %s319 = sadd.s32 %s317, %s318
      %s320 = smul.addr %s319, 4
      %s321 = scalar_lea.vmem %s1, %s320
      %s322 = smul.u32 2, %s22
      %s323 = smul.u32 2, %s22
      %p324 = scmp.lt.s32.totalorder %s21, 1
      %s325 = scalar_select %p324, %s21, 1
      %p326 = scmp.lt.s32.totalorder %s323, 1
      %s327 = scalar_select %p326, %s323, 1
      %s328 = smul.addr %s325, 32
      %s329 = sadd.s32 %s327, %s328
      %s330 = smul.addr %s329, 4
      %s331 = scalar_lea.vmem %s2, %s330
      %s332 = smul.u32 2, %s22
      %s333 = smul.u32 32, %s22
      %p334 = scmp.lt.s32.totalorder %s333, 31
      %s335 = scalar_select %p334, %s333, 31
      %s336 = smul.addr %s335, 8
      %s337 = scalar_lea.vmem %s3, %s336
      %s338 = smul.u32 32, %s22
      %s339 = smul.u32 2, %s22
      %p340 = scmp.lt.s32.totalorder %s21, 1
      %s341 = scalar_select %p340, %s21, 1
      %p342 = scmp.lt.s32.totalorder %s339, 1
      %s343 = scalar_select %p342, %s339, 1
      %s344 = smul.addr %s341, 2
      %s345 = sadd.s32 %s343, %s344
      %s346 = smul.addr %s345, 8
      %s347 = scalar_lea.vmem %s4, %s346
      %s348 = smul.u32 2, %s22
      %p349 = scmp.lt.s32.totalorder %s21, 1
      %s350 = scalar_select %p349, %s21, 1
      %s351 = smul.addr %s350, 8
      %s352 = scalar_lea.vmem %s5, %s351
      %v353 = vld [vmem:[%s312] sm:$0xf]
      %v354 = vld [vmem:[%s312 + $0x4] sm:$0xf]
      %v355 = vld [vmem:[%s321] sm:$0xff]
      %v356 = vld [vmem:[%s321 + $0x8] sm:$0xff]
      %v357 = vld [vmem:[%s321 + $0x10] sm:$0xff]
      %v358 = vld [vmem:[%s321 + $0x18] sm:$0xff]
      %v359 = vld [vmem:[%s321 + $0x20] sm:$0xff]
      %v360 = vld [vmem:[%s321 + $0x28] sm:$0xff]
      %v361 = vld [vmem:[%s321 + $0x30] sm:$0xff]
      %v362 = vld [vmem:[%s321 + $0x38] sm:$0xff]
      %v363 = vld [vmem:[%s321 + $0x40] sm:$0xff]
      %v364 = vld [vmem:[%s321 + $0x48] sm:$0xff]
      %v365 = vld [vmem:[%s321 + $0x50] sm:$0xff]
      %v366 = vld [vmem:[%s321 + $0x58] sm:$0xff]
      %v367 = vld [vmem:[%s321 + $0x60] sm:$0xff]
      %v368 = vld [vmem:[%s321 + $0x68] sm:$0xff]
      %v369 = vld [vmem:[%s321 + $0x70] sm:$0xff]
      %v370 = vld [vmem:[%s321 + $0x78] sm:$0xff]
      %v371 = vld [vmem:[%s331] sm:$0xff]
      %v372 = vld [vmem:[%s331 + $0x8] sm:$0xff]
      %v373 = vld [vmem:[%s331 + $0x10] sm:$0xff]
      %v374 = vld [vmem:[%s331 + $0x18] sm:$0xff]
      %v375 = vld [vmem:[%s331 + $0x20] sm:$0xff]
      %v376 = vld [vmem:[%s331 + $0x28] sm:$0xff]
      %v377 = vld [vmem:[%s331 + $0x30] sm:$0xff]
      %v378 = vld [vmem:[%s331 + $0x38] sm:$0xff]
      %v379 = vld [vmem:[%s331 + $0x40] sm:$0xff]
      %v380 = vld [vmem:[%s331 + $0x48] sm:$0xff]
      %v381 = vld [vmem:[%s331 + $0x50] sm:$0xff]
      %v382 = vld [vmem:[%s331 + $0x58] sm:$0xff]
      %v383 = vld [vmem:[%s331 + $0x60] sm:$0xff]
      %v384 = vld [vmem:[%s331 + $0x68] sm:$0xff]
      %v385 = vld [vmem:[%s331 + $0x70] sm:$0xff]
      %v386 = vld [vmem:[%s331 + $0x78] sm:$0xff]
      %v389 = vunpack.c.l.b16 %v353
      %v390 = vunpack.c.l.b16 %v354
      %v391 = vpack.c.b16 %v390, %v389
      %v409 = vunpack.c.l.b16 %v355
      %v410 = vunpack.c.h.b16 %v355
      %v411 = vunpack.c.l.b16 %v356
      %v412 = vunpack.c.h.b16 %v356
      %v413 = vunpack.c.l.b16 %v357
      %v414 = vunpack.c.h.b16 %v357
      %v415 = vunpack.c.l.b16 %v358
      %v416 = vunpack.c.h.b16 %v358
      %v417 = vunpack.c.l.b16 %v359
      %v418 = vunpack.c.h.b16 %v359
      %v419 = vunpack.c.l.b16 %v360
      %v420 = vunpack.c.h.b16 %v360
      %v421 = vunpack.c.l.b16 %v361
      %v422 = vunpack.c.h.b16 %v361
      %v423 = vunpack.c.l.b16 %v362
      %v424 = vunpack.c.h.b16 %v362
      %v425 = vunpack.c.l.b16 %v363
      %v426 = vunpack.c.h.b16 %v363
      %v427 = vunpack.c.l.b16 %v364
      %v428 = vunpack.c.h.b16 %v364
      %v429 = vunpack.c.l.b16 %v365
      %v430 = vunpack.c.h.b16 %v365
      %v431 = vunpack.c.l.b16 %v366
      %v432 = vunpack.c.h.b16 %v366
      %v433 = vunpack.c.l.b16 %v367
      %v434 = vunpack.c.h.b16 %v367
      %v435 = vunpack.c.l.b16 %v368
      %v436 = vunpack.c.h.b16 %v368
      %v437 = vunpack.c.l.b16 %v369
      %v438 = vunpack.c.h.b16 %v369
      %v439 = vunpack.c.l.b16 %v370
      %v440 = vunpack.c.h.b16 %v370
      %v441 = vpack.c.b16 %v411, %v409
      %v442 = vpack.c.b16 %v412, %v410
      %v443 = vpack.c.b16 %v415, %v413
      %v444 = vpack.c.b16 %v416, %v414
      %v445 = vpack.c.b16 %v419, %v417
      %v446 = vpack.c.b16 %v420, %v418
      %v447 = vpack.c.b16 %v423, %v421
      %v448 = vpack.c.b16 %v424, %v422
      %v449 = vpack.c.b16 %v427, %v425
      %v450 = vpack.c.b16 %v428, %v426
      %v451 = vpack.c.b16 %v431, %v429
      %v452 = vpack.c.b16 %v432, %v430
      %v453 = vpack.c.b16 %v435, %v433
      %v454 = vpack.c.b16 %v436, %v434
      %v455 = vpack.c.b16 %v439, %v437
      %v456 = vpack.c.b16 %v440, %v438
      %473 = vmatpush.bf16.msra.mxu0 %v455
      %474 = vmatpush.bf16.msra.mxu0 %v453
      %475 = vmatpush.bf16.msra.mxu0 %v451
      %476 = vmatpush.bf16.msra.mxu0 %v449
      %477 = vmatpush.bf16.msra.mxu0 %v447
      %478 = vmatpush.bf16.msra.mxu0 %v445
      %479 = vmatpush.bf16.msra.mxu0 %v443
      %480 = vmatpush.bf16.msra.mxu0 %v441
      %481 = vmatmul.bf16.gmra.mxu0 %v391
      %v482 = vpop.f32.mrf.mxu0
      %v483 = vadd.f32 0.0, %v482
      %v484 = vpop.f32.mrf.mxu0
      %v485 = vadd.f32 0.0, %v484
      %486 = vdwg.mxu0
      %487 = vmatpush.bf16.msra.mxu0 %v456
      %488 = vmatpush.bf16.msra.mxu0 %v454
      %489 = vmatpush.bf16.msra.mxu0 %v452
      %490 = vmatpush.bf16.msra.mxu0 %v450
      %491 = vmatpush.bf16.msra.mxu0 %v448
      %492 = vmatpush.bf16.msra.mxu0 %v446
      %493 = vmatpush.bf16.msra.mxu0 %v444
      %494 = vmatpush.bf16.msra.mxu0 %v442
      %495 = vmatmul.bf16.gmra.mxu0 %v391
      %v496 = vpop.f32.mrf.mxu0
      %v497 = vadd.f32 0.0, %v496
      %v498 = vpop.f32.mrf.mxu0
      %v499 = vadd.f32 0.0, %v498
      %500 = vdwg.mxu0
      %v517 = vunpack.c.l.b16 %v371
      %v518 = vunpack.c.h.b16 %v371
      %v519 = vunpack.c.l.b16 %v372
      %v520 = vunpack.c.h.b16 %v372
      %v521 = vunpack.c.l.b16 %v373
      %v522 = vunpack.c.h.b16 %v373
      %v523 = vunpack.c.l.b16 %v374
      %v524 = vunpack.c.h.b16 %v374
      %v525 = vunpack.c.l.b16 %v375
      %v526 = vunpack.c.h.b16 %v375
      %v527 = vunpack.c.l.b16 %v376
      %v528 = vunpack.c.h.b16 %v376
      %v529 = vunpack.c.l.b16 %v377
      %v530 = vunpack.c.h.b16 %v377
      %v531 = vunpack.c.l.b16 %v378
      %v532 = vunpack.c.h.b16 %v378
      %v533 = vunpack.c.l.b16 %v379
      %v534 = vunpack.c.h.b16 %v379
      %v535 = vunpack.c.l.b16 %v380
      %v536 = vunpack.c.h.b16 %v380
      %v537 = vunpack.c.l.b16 %v381
      %v538 = vunpack.c.h.b16 %v381
      %v539 = vunpack.c.l.b16 %v382
      %v540 = vunpack.c.h.b16 %v382
      %v541 = vunpack.c.l.b16 %v383
      %v542 = vunpack.c.h.b16 %v383
      %v543 = vunpack.c.l.b16 %v384
      %v544 = vunpack.c.h.b16 %v384
      %v545 = vunpack.c.l.b16 %v385
      %v546 = vunpack.c.h.b16 %v385
      %v547 = vunpack.c.l.b16 %v386
      %v548 = vunpack.c.h.b16 %v386
      %v549 = vpack.c.b16 %v519, %v517
      %v550 = vpack.c.b16 %v520, %v518
      %v551 = vpack.c.b16 %v523, %v521
      %v552 = vpack.c.b16 %v524, %v522
      %v553 = vpack.c.b16 %v527, %v525
      %v554 = vpack.c.b16 %v528, %v526
      %v555 = vpack.c.b16 %v531, %v529
      %v556 = vpack.c.b16 %v532, %v530
      %v557 = vpack.c.b16 %v535, %v533
      %v558 = vpack.c.b16 %v536, %v534
      %v559 = vpack.c.b16 %v539, %v537
      %v560 = vpack.c.b16 %v540, %v538
      %v561 = vpack.c.b16 %v543, %v541
      %v562 = vpack.c.b16 %v544, %v542
      %v563 = vpack.c.b16 %v547, %v545
      %v564 = vpack.c.b16 %v548, %v546
      %581 = vmatpush.bf16.msra.mxu0 %v563
      %582 = vmatpush.bf16.msra.mxu0 %v561
      %583 = vmatpush.bf16.msra.mxu0 %v559
      %584 = vmatpush.bf16.msra.mxu0 %v557
      %585 = vmatpush.bf16.msra.mxu0 %v555
      %586 = vmatpush.bf16.msra.mxu0 %v553
      %587 = vmatpush.bf16.msra.mxu0 %v551
      %588 = vmatpush.bf16.msra.mxu0 %v549
      %589 = vmatmul.bf16.gmra.mxu0 %v391
      %v590 = vpop.f32.mrf.mxu0
      %v591 = vadd.f32 0.0, %v590
      %v592 = vpop.f32.mrf.mxu0
      %v593 = vadd.f32 0.0, %v592
      %594 = vdwg.mxu0
      %595 = vmatpush.bf16.msra.mxu0 %v564
      %596 = vmatpush.bf16.msra.mxu0 %v562
      %597 = vmatpush.bf16.msra.mxu0 %v560
      %598 = vmatpush.bf16.msra.mxu0 %v558
      %599 = vmatpush.bf16.msra.mxu0 %v556
      %600 = vmatpush.bf16.msra.mxu0 %v554
      %601 = vmatpush.bf16.msra.mxu0 %v552
      %602 = vmatpush.bf16.msra.mxu0 %v550
      %603 = vmatmul.bf16.gmra.mxu0 %v391
      %v604 = vpop.f32.mrf.mxu0
      %v605 = vadd.f32 0.0, %v604
      %v606 = vpop.f32.mrf.mxu0
      %v607 = vadd.f32 0.0, %v606
      %608 = vdwg.mxu0
      %v609 = vsub.f32 %v483, %v593
      %v610 = vsub.f32 %v497, %v607
      %v611 = vadd.f32 %v591, %v485
      %v612 = vadd.f32 %v605, %v499
      %v613 = vmul.f32 %v609, %v609
      %v614 = vmul.f32 %v610, %v610
      %v615 = vmul.f32 %v611, %v611
      %v616 = vmul.f32 %v612, %v612
      %v617 = vadd.f32 %v613, %v615
      %v618 = vadd.f32 %v614, %v616
      %619 = vst [vmem:[%s347] sm:$0xff] %v617
      %620 = vst [vmem:[%s347 + $0x8] sm:$0xff] %v618
      %p621 = scmp.eq.s32.totalorder %s22, 0
      // Predicated region
      $region37: #{_forward_impl.4} parent=35 // pred_check
        %p622 = pneg %p621
      $region38: #{_forward_impl.4} parent=35 // pred_check_branch
        %624 = sbr.rel (%p622) target = $region40
      $region39: #{_forward_impl.4} parent=35 // pred_region
        %625 = vst [vmem:[%s352] sm:$0xff] 0.0
      $region40: #{_forward_impl.4} parent=35 // pred_fallthru
        _
      %v626 = vld [vmem:[%s352] sm:$0xff]
      %v627 = vld [vmem:[%s337] sm:$0xff]
      %v628 = vld [vmem:[%s337 + $0x8] sm:$0xff]
      %v629 = vld [vmem:[%s337 + $0x10] sm:$0xff]
      %v630 = vld [vmem:[%s337 + $0x18] sm:$0xff]
      %v631 = vld [vmem:[%s337 + $0x20] sm:$0xff]
      %v632 = vld [vmem:[%s337 + $0x28] sm:$0xff]
      %v633 = vld [vmem:[%s337 + $0x30] sm:$0xff]
      %v634 = vld [vmem:[%s337 + $0x38] sm:$0xff]
      %v635 = vld [vmem:[%s337 + $0x40] sm:$0xff]
      %v636 = vld [vmem:[%s337 + $0x48] sm:$0xff]
      %v637 = vld [vmem:[%s337 + $0x50] sm:$0xff]
      %v638 = vld [vmem:[%s337 + $0x58] sm:$0xff]
      %v639 = vld [vmem:[%s337 + $0x60] sm:$0xff]
      %v640 = vld [vmem:[%s337 + $0x68] sm:$0xff]
      %v641 = vld [vmem:[%s337 + $0x70] sm:$0xff]
      %v642 = vld [vmem:[%s337 + $0x78] sm:$0xff]
      %v643 = vld [vmem:[%s337 + $0x80] sm:$0xff]
      %v644 = vld [vmem:[%s337 + $0x88] sm:$0xff]
      %v645 = vld [vmem:[%s337 + $0x90] sm:$0xff]
      %v646 = vld [vmem:[%s337 + $0x98] sm:$0xff]
      %v647 = vld [vmem:[%s337 + $0xa0] sm:$0xff]
      %v648 = vld [vmem:[%s337 + $0xa8] sm:$0xff]
      %v649 = vld [vmem:[%s337 + $0xb0] sm:$0xff]
      %v650 = vld [vmem:[%s337 + $0xb8] sm:$0xff]
      %v651 = vld [vmem:[%s337 + $0xc0] sm:$0xff]
      %v652 = vld [vmem:[%s337 + $0xc8] sm:$0xff]
      %v653 = vld [vmem:[%s337 + $0xd0] sm:$0xff]
      %v654 = vld [vmem:[%s337 + $0xd8] sm:$0xff]
      %v655 = vld [vmem:[%s337 + $0xe0] sm:$0xff]
      %v656 = vld [vmem:[%s337 + $0xe8] sm:$0xff]
      %v657 = vld [vmem:[%s337 + $0xf0] sm:$0xff]
      %v658 = vld [vmem:[%s337 + $0xf8] sm:$0xff]
      %659 = vmatpush.msra.mxu0 %v642
      %660 = vmatpush.msra.mxu0 %v641
      %661 = vmatpush.msra.mxu0 %v640
      %662 = vmatpush.msra.mxu0 %v639
      %663 = vmatpush.msra.mxu0 %v638
      %664 = vmatpush.msra.mxu0 %v637
      %665 = vmatpush.msra.mxu0 %v636
      %666 = vmatpush.msra.mxu0 %v635
      %667 = vmatpush.msra.mxu0 %v634
      %668 = vmatpush.msra.mxu0 %v633
      %669 = vmatpush.msra.mxu0 %v632
      %670 = vmatpush.msra.mxu0 %v631
      %671 = vmatpush.msra.mxu0 %v630
      %672 = vmatpush.msra.mxu0 %v629
      %673 = vmatpush.msra.mxu0 %v628
      %674 = vmatpush.msra.mxu0 %v627
      %675 = vmatmul.f32.gmra.mxu0 %v617
      %v676 = vpop.f32.mrf.mxu0
      %v677 = vadd.f32 0.0, %v676
      %678 = vdwg.mxu0
      %679 = vmatpush.msra.mxu0 %v658
      %680 = vmatpush.msra.mxu0 %v657
      %681 = vmatpush.msra.mxu0 %v656
      %682 = vmatpush.msra.mxu0 %v655
      %683 = vmatpush.msra.mxu0 %v654
      %684 = vmatpush.msra.mxu0 %v653
      %685 = vmatpush.msra.mxu0 %v652
      %686 = vmatpush.msra.mxu0 %v651
      %687 = vmatpush.msra.mxu0 %v650
      %688 = vmatpush.msra.mxu0 %v649
      %689 = vmatpush.msra.mxu0 %v648
      %690 = vmatpush.msra.mxu0 %v647
      %691 = vmatpush.msra.mxu0 %v646
      %692 = vmatpush.msra.mxu0 %v645
      %693 = vmatpush.msra.mxu0 %v644
      %694 = vmatpush.msra.mxu0 %v643
      %695 = vmatmul.f32.gmra.mxu0 %v618
      %v696 = vpop.f32.mrf.mxu0
      %v697 = vadd.f32 %v677, %v696
      %698 = vdwg.mxu0
      %v699 = vadd.f32 %v626, %v697
      %700 = vst [vmem:[%s352] sm:$0xff] %v699
      %s701 = smul.u32 2, %s22
      %p702 = scmp.lt.s32.totalorder %s21, 1
      %s703 = scalar_select %p702, %s21, 1
      %p704 = scmp.lt.s32.totalorder %s701, 1
      %s705 = scalar_select %p704, %s701, 1
      %s706 = smul.addr %s703, 2
      %s707 = sadd.s32 %s705, %s706
      %s708 = smul.addr %s707, 8
      %s709 = scalar_lea.vmem %s4, %s708
      %p710 = scmp.lt.s32.totalorder %s21, 1
      %s711 = scalar_select %p710, %s21, 1
      %s712 = smul.addr %s711, 8
      %s713 = scalar_lea.vmem %s5, %s712
      // Predicated region
      $region41: #{_forward_impl.4} parent=35 // pred_check
        %p714 = pneg %p157
      $region42: #{_forward_impl.4} parent=35 // pred_check_branch
        %716 = sbr.rel (%p714) target = $region44
      $region43: #{_forward_impl.4} parent=35 // pred_region
        %s717 = smul.u32 2, %s22
      $region44: #{_forward_impl.4} parent=35 // pred_fallthru
        _
      // Predicated region
      $region45: #{_forward_impl.4} parent=35 // pred_check
        %p718 = pneg %p183
      $region46: #{_forward_impl.4} parent=35 // pred_check_branch
        %720 = sbr.rel (%p718) target = $region48
      $region47: #{_forward_impl.4} parent=35 // pred_region
        _
      $region48: #{_forward_impl.4} parent=35 // pred_fallthru
        _
    $region36: #{_forward_impl.4} parent=5 // pred_fallthru
      _
    %p721 = scmp.le.s32.totalorder 2, %s12
    // Predicated region
    $region49: #{_forward_impl.4} parent=5 // pred_check
      %p722 = pneg %p721
    $region50: #{_forward_impl.4} parent=5 // pred_check_branch
      %724 = sbr.rel (%p722) target = $region52
    $region51: #{_forward_impl.4} parent=5 // pred_region
      %s725 = ssub.s32 %s12, 2
      // Predicated region
      $region53: #{_forward_impl.4} parent=51 // pred_check
        %p726 = pneg %p163
      $region54: #{_forward_impl.4} parent=51 // pred_check_branch
        %728 = sbr.rel (%p726) target = $region56
      $region55: #{_forward_impl.4} parent=51 // pred_region
        %s729 = smul.u32 2, %s24
        %p730 = scmp.lt.s32.totalorder %s23, 1
        %s731 = scalar_select %p730, %s23, 1
        %p732 = scmp.lt.s32.totalorder %s729, 1
        %s733 = scalar_select %p732, %s729, 1
        %s734 = smul.addr %s731, 2
        %s735 = sadd.s32 %s733, %s734
        %s736 = smul.addr %s735, 8
        %s737 = scalar_lea.vmem %s4, %s736
      $region56: #{_forward_impl.4} parent=51 // pred_fallthru
        _
      // Predicated region
      $region57: #{_forward_impl.4} parent=51 // pred_check
        %p738 = pneg %p189
      $region58: #{_forward_impl.4} parent=51 // pred_check_branch
        %740 = sbr.rel (%p738) target = $region60
      $region59: #{_forward_impl.4} parent=51 // pred_region
        %p741 = scmp.lt.s32.totalorder %s23, 1
        %s742 = scalar_select %p741, %s23, 1
        %s743 = smul.addr %s742, 8
        %s744 = scalar_lea.vmem %s5, %s743
      $region60: #{_forward_impl.4} parent=51 // pred_fallthru
        _
    $region52: #{_forward_impl.4} parent=5 // pred_fallthru
      _
  $region6: #{_forward_impl.4} parent=0 // loop_footer
    %s16 = sadd.s32 1, %s12
  $region7: #{_forward_impl.4} parent=0 // loop_footer_branch
    %11 = sbr.rel target = $region3
  $region8: #{_forward_impl.4} parent=0 // loop_exit
    _

// kernel: _forward_impl.5
$region0: #{_forward_impl.5}
  #allocation0 [shape = 'u32[]', space=smem, size = 0x4, offset = 0x4, fixed_abs, tag = 'smem constant byte address 0x4 - core index']
  #allocation1 [shape = 'u32[72,128]{1,0:T(1,128)}', space=vmem, size = 0x9000, scoped, tag = 'internal scratch']
  %s0 = inlined_call_operand.vmem [shape: f32[2,16,8], index: 0, kind: input, shape index: {}]
  %s1 = inlined_call_operand.vmem [shape: f32[2,8,512], index: 1, kind: input, shape index: {}]
  %s2 = inlined_call_operand.vmem [shape: f32[2,16,512], index: 2, kind: output, shape index: {}]
  %s3 = sld [smem:[#allocation0]]
  $region41: #{_forward_impl.5} parent=0
    _
  %s5 = ssub.s32 1, %s3
  %s6 = scalar_select 0, %s5, %s3
  loop: start=0, step=1, limit=4
  $region2: #{_forward_impl.5} parent=0 // loop_pre_header
    _
  $region3: #{_forward_impl.5} parent=0 // loop_header
    %s8 = sphi 0, %s12
    %p9 = scmp.ge.s32.totalorder %s8, 4
    %s15 = sphi 0, %s27
    %s16 = sphi 0, %s23
    %s17 = sphi 0, %s15
    %s18 = sphi 0, %s16
    %s19 = sphi 0, %s17
    %s20 = sphi 0, %s18
    %s30 = sphi 0, %s32
    %s33 = sphi 0, %s30
    %s34 = sphi 0, %s33
    %s50 = sphi 0, %s34
    %s58 = sphi 0, %s60
    %s61 = sphi 0, %s58
    %s62 = sphi 0, %s61
    %s78 = sphi 0, %s62
    %s86 = sphi 0, %s88
    %s89 = sphi 0, %s86
    %s90 = sphi 0, %s89
    %s106 = sphi 0, %s90
  $region4: #{_forward_impl.5} parent=0 // loop_header_branch
    %11 = sbr.rel (%p9) target = $region8
  $region5: #{_forward_impl.5} parent=0 // loop_body
    %s13 = ssub.s32 %s8, 1
    %s14 = ssub.s32 %s8, 2
    %s21 = sadd.s32 1, %s16
    %p22 = scmp.ge.s32.totalorder %s21, 1
    %s23 = scalar_select %p22, 0, %s21
    %s24 = sadd.s32 1, %s15
    %s25 = scalar_select %p22, %s24, %s15
    %p26 = scmp.ge.s32.totalorder %s25, 2
    %s27 = scalar_select %p26, 0, %s25
    %s28 = ssub.s32 %s15, %s27
    %p29 = scmp.eq.s32.totalorder %s28, 0
    %s31 = sadd.s32 %s30, 1
    %s32 = scalar_select %p29, %s30, %s31
    %p35 = pneg %p29
    %p36 = scmp.eq.s32.totalorder %s8, 1
    %p37 = por %p35, %p36
    %p38 = scmp.ne.s32.totalorder %s30, %s33
    %p39 = scmp.eq.s32.totalorder %s8, 0
    %p40 = por %p38, %p39
    %p41 = scmp.ne.s32.totalorder %s30, %s33
    %p42 = scmp.eq.s32.totalorder %s13, 1
    %p43 = por %p41, %p42
    %p44 = scmp.ne.s32.totalorder %s33, %s34
    %p45 = scmp.eq.s32.totalorder %s13, 0
    %p46 = por %p44, %p45
    %p47 = scmp.ne.s32.totalorder %s33, %s34
    %p48 = scmp.eq.s32.totalorder %s14, 1
    %p49 = por %p47, %p48
    %p51 = scmp.ne.s32.totalorder %s34, %s50
    %p52 = scmp.eq.s32.totalorder %s14, 0
    %p53 = por %p51, %p52
    %s54 = ssub.s32 %s15, %s27
    %s55 = ssub.s32 %s16, %s23
    %s56 = sor.u32 %s54, %s55
    %p57 = scmp.eq.s32.totalorder %s56, 0
    %s59 = sadd.s32 %s58, 1
    %s60 = scalar_select %p57, %s58, %s59
    %p63 = pneg %p57
    %p64 = scmp.eq.s32.totalorder %s8, 1
    %p65 = por %p63, %p64
    %p66 = scmp.ne.s32.totalorder %s58, %s61
    %p67 = scmp.eq.s32.totalorder %s8, 0
    %p68 = por %p66, %p67
    %p69 = scmp.ne.s32.totalorder %s58, %s61
    %p70 = scmp.eq.s32.totalorder %s13, 1
    %p71 = por %p69, %p70
    %p72 = scmp.ne.s32.totalorder %s61, %s62
    %p73 = scmp.eq.s32.totalorder %s13, 0
    %p74 = por %p72, %p73
    %p75 = scmp.ne.s32.totalorder %s61, %s62
    %p76 = scmp.eq.s32.totalorder %s14, 1
    %p77 = por %p75, %p76
    %p79 = scmp.ne.s32.totalorder %s62, %s78
    %p80 = scmp.eq.s32.totalorder %s14, 0
    %p81 = por %p79, %p80
    %s82 = ssub.s32 %s15, %s27
    %s83 = ssub.s32 %s16, %s23
    %s84 = sor.u32 %s82, %s83
    %p85 = scmp.eq.s32.totalorder %s84, 0
    %s87 = sadd.s32 %s86, 1
    %s88 = scalar_select %p85, %s86, %s87
    %p91 = pneg %p85
    %p92 = scmp.eq.s32.totalorder %s8, 1
    %p93 = por %p91, %p92
    %p94 = scmp.ne.s32.totalorder %s86, %s89
    %p95 = scmp.eq.s32.totalorder %s8, 0
    %p96 = por %p94, %p95
    %p97 = scmp.ne.s32.totalorder %s86, %s89
    %p98 = scmp.eq.s32.totalorder %s13, 1
    %p99 = por %p97, %p98
    %p100 = scmp.ne.s32.totalorder %s89, %s90
    %p101 = scmp.eq.s32.totalorder %s13, 0
    %p102 = por %p100, %p101
    %p103 = scmp.ne.s32.totalorder %s89, %s90
    %p104 = scmp.eq.s32.totalorder %s14, 1
    %p105 = por %p103, %p104
    %p107 = scmp.ne.s32.totalorder %s90, %s106
    %p108 = scmp.eq.s32.totalorder %s14, 0
    %p109 = por %p107, %p108
    %p110 = scmp.le.s32.totalorder 1, %s8
    %p111 = scmp.lt.s32.totalorder %s8, 3
    %p112 = pnand %p110, %p111
    %p113 = pneg %p112
    // Predicated region
    $region9: #{_forward_impl.5} parent=5 // pred_check
      _
    $region10: #{_forward_impl.5} parent=5 // pred_check_branch
      %115 = sbr.rel (%p112) target = $region12
    $region11: #{_forward_impl.5} parent=5 // pred_region
      %s116 = ssub.s32 %s8, 1
    $region12: #{_forward_impl.5} parent=5 // pred_fallthru
      _
    %p117 = scmp.lt.s32.totalorder %s8, 2
    // Predicated region
    $region13: #{_forward_impl.5} parent=5 // pred_check
      %p118 = pneg %p117
    $region14: #{_forward_impl.5} parent=5 // pred_check_branch
      %120 = sbr.rel (%p118) target = $region16
    $region15: #{_forward_impl.5} parent=5 // pred_region
      // Predicated region
      $region17: #{_forward_impl.5} parent=15 // pred_check
        %p121 = pneg %p40
      $region18: #{_forward_impl.5} parent=15 // pred_check_branch
        %123 = sbr.rel (%p121) target = $region20
      $region19: #{_forward_impl.5} parent=15 // pred_region
        %p124 = scmp.lt.s32.totalorder %s15, 1
        %s125 = scalar_select %p124, %s15, 1
        %s126 = smul.addr %s125, 2
        %s127 = smul.addr %s126, 8
        %s128 = scalar_lea.vmem %s0, %s127
      $region20: #{_forward_impl.5} parent=15 // pred_fallthru
        _
      // Predicated region
      $region21: #{_forward_impl.5} parent=15 // pred_check
        %p129 = pneg %p68
      $region22: #{_forward_impl.5} parent=15 // pred_check_branch
        %131 = sbr.rel (%p129) target = $region24
      $region23: #{_forward_impl.5} parent=15 // pred_region
        %s132 = smul.u32 4, %s16
        %p133 = scmp.lt.s32.totalorder %s15, 1
        %s134 = scalar_select %p133, %s15, 1
        %p135 = scmp.lt.s32.totalorder %s132, 3
        %s136 = scalar_select %p135, %s132, 3
        %s137 = smul.addr %s134, 4
        %s138 = sadd.s32 %s136, %s137
        %s139 = smul.addr %s138, 8
        %s140 = scalar_lea.vmem %s1, %s139
        %s141 = smul.u32 4, %s16
      $region24: #{_forward_impl.5} parent=15 // pred_fallthru
        _
    $region16: #{_forward_impl.5} parent=5 // pred_fallthru
      _
    %p142 = scmp.le.s32.totalorder 1, %s8
    %p143 = scmp.lt.s32.totalorder %s8, 3
    %p144 = pnand %p142, %p143
    %p145 = pneg %p144
    // Predicated region
    $region25: #{_forward_impl.5} parent=5 // pred_check
      _
    $region26: #{_forward_impl.5} parent=5 // pred_check_branch
      %147 = sbr.rel (%p144) target = $region28
    $region27: #{_forward_impl.5} parent=5 // pred_region
      %s148 = ssub.s32 %s8, 1
      %p149 = scmp.lt.s32.totalorder %s17, 1
      %s150 = scalar_select %p149, %s17, 1
      %s151 = smul.addr %s150, 2
      %s152 = smul.addr %s151, 8
      %s153 = scalar_lea.vmem %s0, %s152
      %p154 = pneg %p46
      %p155 = pneg %p43
      %s156 = smul.u32 4, %s18
      %p157 = scmp.lt.s32.totalorder %s17, 1
      %s158 = scalar_select %p157, %s17, 1
      %p159 = scmp.lt.s32.totalorder %s156, 3
      %s160 = scalar_select %p159, %s156, 3
      %s161 = smul.addr %s158, 4
      %s162 = sadd.s32 %s160, %s161
      %s163 = smul.addr %s162, 8
      %s164 = scalar_lea.vmem %s1, %s163
      %p165 = pneg %p74
      %p166 = pneg %p71
      %p167 = pneg %p102
      %p168 = pneg %p99
      %s169 = smul.u32 4, %s18
      %p170 = scmp.lt.s32.totalorder %s17, 1
      %s171 = scalar_select %p170, %s17, 1
      %p172 = scmp.lt.s32.totalorder %s169, 3
      %s173 = scalar_select %p172, %s169, 3
      %s174 = smul.addr %s171, 8
      %s175 = sadd.s32 %s173, %s174
      %s176 = smul.addr %s175, 8
      %s177 = scalar_lea.vmem %s2, %s176
      %p178 = scmp.lt.s32.totalorder %s17, 1
      %s179 = scalar_select %p178, %s17, 1
      %s180 = smul.addr %s179, 2
      %s181 = smul.addr %s180, 8
      %s182 = scalar_lea.vmem %s0, %s181
      %s183 = smul.u32 4, %s18
      %p184 = scmp.lt.s32.totalorder %s17, 1
      %s185 = scalar_select %p184, %s17, 1
      %p186 = scmp.lt.s32.totalorder %s183, 3
      %s187 = scalar_select %p186, %s183, 3
      %s188 = smul.addr %s185, 4
      %s189 = sadd.s32 %s187, %s188
      %s190 = smul.addr %s189, 8
      %s191 = scalar_lea.vmem %s1, %s190
      %s192 = smul.u32 4, %s18
      %s193 = smul.u32 4, %s18
      %p194 = scmp.lt.s32.totalorder %s17, 1
      %s195 = scalar_select %p194, %s17, 1
      %p196 = scmp.lt.s32.totalorder %s193, 3
      %s197 = scalar_select %p196, %s193, 3
      %s198 = smul.addr %s195, 8
      %s199 = sadd.s32 %s197, %s198
      %s200 = smul.addr %s199, 8
      %s201 = scalar_lea.vmem %s2, %s200
      %s202 = smul.u32 4, %s18
      %v203 = vld [vmem:[%s182] sm:$0xff]
      %v204 = vld [vmem:[%s182 + $0x8] sm:$0xff]
      %v205 = vld [vmem:[%s191] sm:$0xff]
      %v206 = vld [vmem:[%s191 + $0x8] sm:$0xff]
      %v207 = vld [vmem:[%s191 + $0x10] sm:$0xff]
      %v208 = vld [vmem:[%s191 + $0x18] sm:$0xff]
      %vm209 = vcmask 64512
      %v211 = vsel %vm209, %v203, 0
      %v214 = vsel %vm209, %v204, 0
      %216 = vmatpush.msra.mxu0 0.0
      %217 = vmatpush.msra.mxu0 0.0
      %218 = vmatpush.msra.mxu0 0.0
      %219 = vmatpush.msra.mxu0 0.0
      %220 = vmatpush.msra.mxu0 0.0
      %221 = vmatpush.msra.mxu0 0.0
      %222 = vmatpush.msra.mxu0 0.0
      %223 = vmatpush.msra.mxu0 0.0
      %224 = vmatpush.msra.mxu0 0.0
      %225 = vmatpush.msra.mxu0 0.0
      %226 = vmatpush.msra.mxu0 0.0
      %227 = vmatpush.msra.mxu0 0.0
      %228 = vmatpush.msra.mxu0 0.0
      %229 = vmatpush.msra.mxu0 0.0
      %230 = vmatpush.msra.mxu0 0.0
      %231 = vmatpush.msra.mxu0 %v205
      %232 = vmatmul.f32.gmra.mxu0 %v211
      %v233 = vpop.f32.mrf.mxu0
      %v234 = vadd.f32 0.0, %v233
      %235 = vmatmul.f32.gmra.mxu0 %v214
      %v236 = vpop.f32.mrf.mxu0
      %v237 = vadd.f32 0.0, %v236
      %238 = vdwg.mxu0
      %239 = vmatpush.msra.mxu0 0.0
      %240 = vmatpush.msra.mxu0 0.0
      %241 = vmatpush.msra.mxu0 0.0
      %242 = vmatpush.msra.mxu0 0.0
      %243 = vmatpush.msra.mxu0 0.0
      %244 = vmatpush.msra.mxu0 0.0
      %245 = vmatpush.msra.mxu0 0.0
      %246 = vmatpush.msra.mxu0 0.0
      %247 = vmatpush.msra.mxu0 0.0
      %248 = vmatpush.msra.mxu0 0.0
      %249 = vmatpush.msra.mxu0 0.0
      %250 = vmatpush.msra.mxu0 0.0
      %251 = vmatpush.msra.mxu0 0.0
      %252 = vmatpush.msra.mxu0 0.0
      %253 = vmatpush.msra.mxu0 0.0
      %254 = vmatpush.msra.mxu0 %v206
      %255 = vmatmul.f32.gmra.mxu0 %v211
      %v256 = vpop.f32.mrf.mxu0
      %v257 = vadd.f32 0.0, %v256
      %258 = vmatmul.f32.gmra.mxu0 %v214
      %v259 = vpop.f32.mrf.mxu0
      %v260 = vadd.f32 0.0, %v259
      %261 = vdwg.mxu0
      %262 = vmatpush.msra.mxu0 0.0
      %263 = vmatpush.msra.mxu0 0.0
      %264 = vmatpush.msra.mxu0 0.0
      %265 = vmatpush.msra.mxu0 0.0
      %266 = vmatpush.msra.mxu0 0.0
      %267 = vmatpush.msra.mxu0 0.0
      %268 = vmatpush.msra.mxu0 0.0
      %269 = vmatpush.msra.mxu0 0.0
      %270 = vmatpush.msra.mxu0 0.0
      %271 = vmatpush.msra.mxu0 0.0
      %272 = vmatpush.msra.mxu0 0.0
      %273 = vmatpush.msra.mxu0 0.0
      %274 = vmatpush.msra.mxu0 0.0
      %275 = vmatpush.msra.mxu0 0.0
      %276 = vmatpush.msra.mxu0 0.0
      %277 = vmatpush.msra.mxu0 %v207
      %278 = vmatmul.f32.gmra.mxu0 %v211
      %v279 = vpop.f32.mrf.mxu0
      %v280 = vadd.f32 0.0, %v279
      %281 = vmatmul.f32.gmra.mxu0 %v214
      %v282 = vpop.f32.mrf.mxu0
      %v283 = vadd.f32 0.0, %v282
      %284 = vdwg.mxu0
      %285 = vmatpush.msra.mxu0 0.0
      %286 = vmatpush.msra.mxu0 0.0
      %287 = vmatpush.msra.mxu0 0.0
      %288 = vmatpush.msra.mxu0 0.0
      %289 = vmatpush.msra.mxu0 0.0
      %290 = vmatpush.msra.mxu0 0.0
      %291 = vmatpush.msra.mxu0 0.0
      %292 = vmatpush.msra.mxu0 0.0
      %293 = vmatpush.msra.mxu0 0.0
      %294 = vmatpush.msra.mxu0 0.0
      %295 = vmatpush.msra.mxu0 0.0
      %296 = vmatpush.msra.mxu0 0.0
      %297 = vmatpush.msra.mxu0 0.0
      %298 = vmatpush.msra.mxu0 0.0
      %299 = vmatpush.msra.mxu0 0.0
      %300 = vmatpush.msra.mxu0 %v208
      %301 = vmatmul.f32.gmra.mxu0 %v211
      %v302 = vpop.f32.mrf.mxu0
      %v303 = vadd.f32 0.0, %v302
      %304 = vmatmul.f32.gmra.mxu0 %v214
      %v305 = vpop.f32.mrf.mxu0
      %v306 = vadd.f32 0.0, %v305
      %307 = vdwg.mxu0
      %308 = vst [vmem:[%s201] sm:$0xff] %v234
      %309 = vst [vmem:[%s201 + $0x8] sm:$0xff] %v257
      %310 = vst [vmem:[%s201 + $0x10] sm:$0xff] %v280
      %311 = vst [vmem:[%s201 + $0x18] sm:$0xff] %v303
      %312 = vst [vmem:[%s201 + $0x20] sm:$0xff] %v237
      %313 = vst [vmem:[%s201 + $0x28] sm:$0xff] %v260
      %314 = vst [vmem:[%s201 + $0x30] sm:$0xff] %v283
      %315 = vst [vmem:[%s201 + $0x38] sm:$0xff] %v306
      %s316 = smul.u32 4, %s18
      %p317 = scmp.lt.s32.totalorder %s17, 1
      %s318 = scalar_select %p317, %s17, 1
      %p319 = scmp.lt.s32.totalorder %s316, 3
      %s320 = scalar_select %p319, %s316, 3
      %s321 = smul.addr %s318, 8
      %s322 = sadd.s32 %s320, %s321
      %s323 = smul.addr %s322, 8
      %s324 = scalar_lea.vmem %s2, %s323
      // Predicated region
      $region29: #{_forward_impl.5} parent=27 // pred_check
        %p325 = pneg %p99
      $region30: #{_forward_impl.5} parent=27 // pred_check_branch
        %327 = sbr.rel (%p325) target = $region32
      $region31: #{_forward_impl.5} parent=27 // pred_region
        %s328 = smul.u32 4, %s18
      $region32: #{_forward_impl.5} parent=27 // pred_fallthru
        _
    $region28: #{_forward_impl.5} parent=5 // pred_fallthru
      _
    %p329 = scmp.le.s32.totalorder 2, %s8
    // Predicated region
    $region33: #{_forward_impl.5} parent=5 // pred_check
      %p330 = pneg %p329
    $region34: #{_forward_impl.5} parent=5 // pred_check_branch
      %332 = sbr.rel (%p330) target = $region36
    $region35: #{_forward_impl.5} parent=5 // pred_region
      %s333 = ssub.s32 %s8, 2
      // Predicated region
      $region37: #{_forward_impl.5} parent=35 // pred_check
        %p334 = pneg %p105
      $region38: #{_forward_impl.5} parent=35 // pred_check_branch
        %336 = sbr.rel (%p334) target = $region40
      $region39: #{_forward_impl.5} parent=35 // pred_region
        %s337 = smul.u32 4, %s20
        %p338 = scmp.lt.s32.totalorder %s19, 1
        %s339 = scalar_select %p338, %s19, 1
        %p340 = scmp.lt.s32.totalorder %s337, 3
        %s341 = scalar_select %p340, %s337, 3
        %s342 = smul.addr %s339, 8
        %s343 = sadd.s32 %s341, %s342
        %s344 = smul.addr %s343, 8
        %s345 = scalar_lea.vmem %s2, %s344
      $region40: #{_forward_impl.5} parent=35 // pred_fallthru
        _
    $region36: #{_forward_impl.5} parent=5 // pred_fallthru
      _
  $region6: #{_forward_impl.5} parent=0 // loop_footer
    %s12 = sadd.s32 1, %s8
  $region7: #{_forward_impl.5} parent=0 // loop_footer_branch
    %7 = sbr.rel target = $region3
  $region8: #{_forward_impl.5} parent=0 // loop_exit
    _

</llo_original>
